<compile_context>
chip_gen: v7x
topology: tpu7x:2x2x1
jax: 0.10.0
libtpu: 0.0.40
codegen_flags: <defaults>
</compile_context>

<pallas_src>
import jax
import jax.numpy as jnp
from jax.experimental import pallas as pl
from jax.experimental.pallas import tpu as pltpu

INPUT_SIZE = 32          # X_train.shape[1] surrogate
HIDDEN = (256, 128, 64, 32)
OUT = 1
BN_EPS = 1e-5
BATCH = 256              # example batch (2 grid steps at BATCH_TILE=128)
BATCH_TILE = 128         # rows processed per grid step (MXU-friendly)
LANE = 128


def _round_up(n, m):
    return ((n + m - 1) // m) * m


# ----------------------------------------------------------------------------
# Pallas kernel: fused 5-layer MLP (matmul + bias + ReLU chain) for one batch tile
# ----------------------------------------------------------------------------
def mlp_kernel(x_ref,
               w1_ref, b1_ref,
               w2_ref, b2_ref,
               w3_ref, b3_ref,
               w4_ref, b4_ref,
               w5_ref, b5_ref,
               o_ref):
    def layer(h, w_ref, b_ref, relu):
        # bf16 x bf16 MXU matmul, f32 accumulation; bias/ReLU stay f32 (v5e-safe).
        a = jnp.dot(h.astype(jnp.bfloat16), w_ref[...],
                    preferred_element_type=jnp.float32)
        a = a + b_ref[...]
        return jnp.maximum(a, 0.0) if relu else a

    h = x_ref[...]                         # already bf16 (no-op cast inside layer)
    h = layer(h, w1_ref, b1_ref, True)     # fc1 (+ folded bn1) + relu  (dropout = id)
    h = layer(h, w2_ref, b2_ref, True)     # fc2 (+ folded bn2) + relu
    h = layer(h, w3_ref, b3_ref, True)     # fc3 (+ folded bn3) + relu  (out padded 64->128)
    h = layer(h, w4_ref, b4_ref, True)     # fc4 (+ folded bn4) + relu  (out padded 32->128)
    out = layer(h, w5_ref, b5_ref, False)  # fc5 (out padded 1->128, lane-dense store)
    o_ref[...] = out.astype(o_ref.dtype)


def _forward_impl(x, padded_params):
    """x: (B, INPUT_SIZE) f32.  padded_params: list of (W bf16 (in_p,out_p), b f32 (1,out_p))."""
    B, D = x.shape
    assert D == INPUT_SIZE
    out_pad = padded_params[-1][0].shape[1]

    # Pad batch to a multiple of BATCH_TILE and cast to bf16 (MXU input dtype).
    B_pad = _round_up(max(B, BATCH_TILE), BATCH_TILE)
    xb = x.astype(jnp.bfloat16)
    if B_pad != B:
        xb = jnp.zeros((B_pad, D), jnp.bfloat16).at[:B].set(xb)

    flat = []
    in_specs = [pl.BlockSpec((BATCH_TILE, D), lambda i: (i, 0))]
    for (w, b) in padded_params:
        flat.extend([w, b])
        # Full-array blocks, constant index_map -> DMA'd once, resident across steps.
        in_specs.append(pl.BlockSpec(w.shape, lambda i: (0, 0)))
        in_specs.append(pl.BlockSpec(b.shape, lambda i: (0, 0)))

    grid = (B_pad // BATCH_TILE,)
    out = pl.pallas_call(
        mlp_kernel,
        out_shape=jax.ShapeDtypeStruct((B_pad, out_pad), jnp.float32),
        grid_spec=pltpu.PrefetchScalarGridSpec(
            num_scalar_prefetch=0,
            grid=grid,
            in_specs=in_specs,
            out_specs=pl.BlockSpec((BATCH_TILE, out_pad), lambda i: (i, 0)),
        ),
        compiler_params=pltpu.CompilerParams(
            dimension_semantics=("parallel",)),
    )(xb, *flat)
    return out[:B, :OUT]


advanced_nn_forward = jax.jit(_forward_impl)


# ----------------------------------------------------------------------------
# Deterministic parameter construction + BN folding + lane padding (plain JAX glue)
# ----------------------------------------------------------------------------
def make_params(key):
    """Returns unpadded folded f32 params [(W (in,out), b (out,)) x 5]."""
    dims = (INPUT_SIZE,) + HIDDEN + (OUT,)
    layers = []
    for li in range(5):
        fan_in, fan_out = dims[li], dims[li + 1]
        key, kw, kb = jax.random.split(key, 3)
        bound = 1.0 / jnp.sqrt(jnp.float32(fan_in))          # PyTorch default Linear init range
        W = jax.random.uniform(kw, (fan_in, fan_out), jnp.float32, -bound, bound)
        b = jax.random.uniform(kb, (fan_out,), jnp.float32, -bound, bound)

        if li < 4:  # fc1..fc4 have a BatchNorm1d after them -> fold (eval mode)
            key, kg, kbt, km, kv = jax.random.split(key, 5)
            gamma = 1.0 + 0.1 * jax.random.normal(kg, (fan_out,), jnp.float32)
            beta = 0.1 * jax.random.normal(kbt, (fan_out,), jnp.float32)
            rmean = 0.1 * jax.random.normal(km, (fan_out,), jnp.float32)
            rvar = 1.0 + 0.1 * jnp.abs(jax.random.normal(kv, (fan_out,), jnp.float32))
            scale = gamma / jnp.sqrt(rvar + BN_EPS)
            W_f = W * scale[None, :]
            b_f = (b - rmean) * scale + beta
        else:       # fc5: no BN
            W_f, b_f = W, b

        layers.append((W_f, b_f))
    return layers


def pad_params(raw):
    """Zero-pad every layer's output dim (and matching next input dim) to 128 lanes;
    cast weights to bf16 for the MXU, keep biases f32."""
    dims = [INPUT_SIZE] + list(HIDDEN) + [OUT]
    pdims = [INPUT_SIZE] + [_round_up(d, LANE) for d in dims[1:]]
    padded = []
    for li, (W, b) in enumerate(raw):
        fi, fo = W.shape
        fi_p, fo_p = pdims[li], pdims[li + 1]
        Wp = jnp.zeros((fi_p, fo_p), jnp.float32).at[:fi, :fo].set(W)
        bp = jnp.zeros((1, fo_p), jnp.float32).at[0, :fo].set(b)
        padded.append((Wp.astype(jnp.bfloat16), bp))
    return padded


def reference_forward(x, raw):
    """Pure-JAX reference using the same bf16-input / f32-accumulate math."""
    h = x
    for i, (w, b) in enumerate(raw):
        h = jnp.dot(h.astype(jnp.bfloat16), w.astype(jnp.bfloat16),
                    preferred_element_type=jnp.float32) + b[None, :]
        if i < 4:
            h = jnp.maximum(h, 0.0)
    return h


if __name__ == "__main__":
    key = jax.random.PRNGKey(0)
    key, kx = jax.random.split(key)
    x = jax.random.normal(kx, (BATCH, INPUT_SIZE), jnp.float32)

    raw_params = make_params(key)
    padded_params = pad_params(raw_params)

    y = advanced_nn_forward(x, padded_params)
    y = jax.block_until_ready(y)

    y_ref = reference_forward(x, raw_params)
    assert y.shape == (BATCH, OUT)
    assert jnp.allclose(y, y_ref, atol=2e-2, rtol=2e-2), "mismatch vs pure-JAX reference"

    print("KERNEL_OK")
</pallas_src>

<mosaic_0001>
module attributes {stable_mosaic.version = 11 : i64} {
  func.func @mlp_kernel(%arg0: i32, %arg1: memref<128x32xbf16, #tpu.memory_space<vmem>>, %arg2: memref<32x256xbf16, #tpu.memory_space<vmem>>, %arg3: memref<1x256xf32, #tpu.memory_space<vmem>>, %arg4: memref<256x128xbf16, #tpu.memory_space<vmem>>, %arg5: memref<1x128xf32, #tpu.memory_space<vmem>>, %arg6: memref<128x128xbf16, #tpu.memory_space<vmem>>, %arg7: memref<1x128xf32, #tpu.memory_space<vmem>>, %arg8: memref<128x128xbf16, #tpu.memory_space<vmem>>, %arg9: memref<1x128xf32, #tpu.memory_space<vmem>>, %arg10: memref<128x128xbf16, #tpu.memory_space<vmem>>, %arg11: memref<1x128xf32, #tpu.memory_space<vmem>>, %arg12: memref<128x128xf32, #tpu.memory_space<vmem>>) attributes {dimension_semantics = [#tpu.dimension_semantics<parallel>], iteration_bounds = array<i64: 2>, scalar_prefetch = 0 : i64, scratch_operands = 0 : i64, tpu.core_type = #tpu.core_type<tc>, window_params = [{transform_indices = @transform_0, window_bounds = array<i64: 128, 32>}, {pipeline_mode = #tpu.pipeline_mode<synchronous>, transform_indices = @transform_1, window_bounds = array<i64: 32, 256>}, {pipeline_mode = #tpu.pipeline_mode<synchronous>, transform_indices = @transform_2, window_bounds = array<i64: 1, 256>}, {pipeline_mode = #tpu.pipeline_mode<synchronous>, transform_indices = @transform_3, window_bounds = array<i64: 256, 128>}, {pipeline_mode = #tpu.pipeline_mode<synchronous>, transform_indices = @transform_4, window_bounds = array<i64: 1, 128>}, {pipeline_mode = #tpu.pipeline_mode<synchronous>, transform_indices = @transform_5, window_bounds = array<i64: 128, 128>}, {pipeline_mode = #tpu.pipeline_mode<synchronous>, transform_indices = @transform_6, window_bounds = array<i64: 1, 128>}, {pipeline_mode = #tpu.pipeline_mode<synchronous>, transform_indices = @transform_7, window_bounds = array<i64: 128, 128>}, {pipeline_mode = #tpu.pipeline_mode<synchronous>, transform_indices = @transform_8, window_bounds = array<i64: 1, 128>}, {pipeline_mode = #tpu.pipeline_mode<synchronous>, transform_indices = @transform_9, window_bounds = array<i64: 128, 128>}, {pipeline_mode = #tpu.pipeline_mode<synchronous>, transform_indices = @transform_10, window_bounds = array<i64: 1, 128>}, {transform_indices = @transform_11, window_bounds = array<i64: 128, 128>}]} {
    %c0 = arith.constant 0 : index
    %c0_0 = arith.constant 0 : index
    %0 = vector.load %arg1[%c0, %c0_0] : memref<128x32xbf16, #tpu.memory_space<vmem>>, vector<128x32xbf16>
    %c0_1 = arith.constant 0 : index
    %c0_2 = arith.constant 0 : index
    %1 = vector.load %arg2[%c0_1, %c0_2] : memref<32x256xbf16, #tpu.memory_space<vmem>>, vector<32x256xbf16>
    %cst = arith.constant dense<0.000000e+00> : vector<128x256xf32>
    %2 = tpu.matmul %0, %1, %cst {dimension_numbers = #tpu.dot_dimension_numbers<[1], [0], [0], [1], [0, 0, 1, 1], [], []>} : vector<128x32xbf16>, vector<32x256xbf16>, vector<128x256xf32> -> vector<128x256xf32>
    %c0_3 = arith.constant 0 : index
    %c0_4 = arith.constant 0 : index
    %3 = vector.load %arg3[%c0_3, %c0_4] : memref<1x256xf32, #tpu.memory_space<vmem>>, vector<1x256xf32>
    %4 = vector.broadcast %3 : vector<1x256xf32> to vector<128x256xf32>
    %5 = arith.addf %2, %4 : vector<128x256xf32>
    %cst_5 = arith.constant 0.000000e+00 : f32
    %6 = vector.broadcast %cst_5 : f32 to vector<128x256xf32>
    %7 = arith.maximumf %5, %6 : vector<128x256xf32>
    %8 = arith.truncf %7 : vector<128x256xf32> to vector<128x256xbf16>
    %c0_6 = arith.constant 0 : index
    %c0_7 = arith.constant 0 : index
    %9 = vector.load %arg4[%c0_6, %c0_7] : memref<256x128xbf16, #tpu.memory_space<vmem>>, vector<256x128xbf16>
    %cst_8 = arith.constant dense<0.000000e+00> : vector<128x128xf32>
    %10 = tpu.matmul %8, %9, %cst_8 {dimension_numbers = #tpu.dot_dimension_numbers<[1], [0], [0], [1], [0, 0, 1, 1], [], []>} : vector<128x256xbf16>, vector<256x128xbf16>, vector<128x128xf32> -> vector<128x128xf32>
    %c0_9 = arith.constant 0 : index
    %c0_10 = arith.constant 0 : index
    %11 = vector.load %arg5[%c0_9, %c0_10] : memref<1x128xf32, #tpu.memory_space<vmem>>, vector<1x128xf32>
    %12 = vector.broadcast %11 : vector<1x128xf32> to vector<128x128xf32>
    %13 = arith.addf %10, %12 : vector<128x128xf32>
    %cst_11 = arith.constant 0.000000e+00 : f32
    %14 = vector.broadcast %cst_11 : f32 to vector<128x128xf32>
    %15 = arith.maximumf %13, %14 : vector<128x128xf32>
    %16 = arith.truncf %15 : vector<128x128xf32> to vector<128x128xbf16>
    %c0_12 = arith.constant 0 : index
    %c0_13 = arith.constant 0 : index
    %17 = vector.load %arg6[%c0_12, %c0_13] : memref<128x128xbf16, #tpu.memory_space<vmem>>, vector<128x128xbf16>
    %cst_14 = arith.constant dense<0.000000e+00> : vector<128x128xf32>
    %18 = tpu.matmul %16, %17, %cst_14 {dimension_numbers = #tpu.dot_dimension_numbers<[1], [0], [0], [1], [0, 0, 1, 1], [], []>} : vector<128x128xbf16>, vector<128x128xbf16>, vector<128x128xf32> -> vector<128x128xf32>
    %c0_15 = arith.constant 0 : index
    %c0_16 = arith.constant 0 : index
    %19 = vector.load %arg7[%c0_15, %c0_16] : memref<1x128xf32, #tpu.memory_space<vmem>>, vector<1x128xf32>
    %20 = vector.broadcast %19 : vector<1x128xf32> to vector<128x128xf32>
    %21 = arith.addf %18, %20 : vector<128x128xf32>
    %cst_17 = arith.constant 0.000000e+00 : f32
    %22 = vector.broadcast %cst_17 : f32 to vector<128x128xf32>
    %23 = arith.maximumf %21, %22 : vector<128x128xf32>
    %24 = arith.truncf %23 : vector<128x128xf32> to vector<128x128xbf16>
    %c0_18 = arith.constant 0 : index
    %c0_19 = arith.constant 0 : index
    %25 = vector.load %arg8[%c0_18, %c0_19] : memref<128x128xbf16, #tpu.memory_space<vmem>>, vector<128x128xbf16>
    %cst_20 = arith.constant dense<0.000000e+00> : vector<128x128xf32>
    %26 = tpu.matmul %24, %25, %cst_20 {dimension_numbers = #tpu.dot_dimension_numbers<[1], [0], [0], [1], [0, 0, 1, 1], [], []>} : vector<128x128xbf16>, vector<128x128xbf16>, vector<128x128xf32> -> vector<128x128xf32>
    %c0_21 = arith.constant 0 : index
    %c0_22 = arith.constant 0 : index
    %27 = vector.load %arg9[%c0_21, %c0_22] : memref<1x128xf32, #tpu.memory_space<vmem>>, vector<1x128xf32>
    %28 = vector.broadcast %27 : vector<1x128xf32> to vector<128x128xf32>
    %29 = arith.addf %26, %28 : vector<128x128xf32>
    %cst_23 = arith.constant 0.000000e+00 : f32
    %30 = vector.broadcast %cst_23 : f32 to vector<128x128xf32>
    %31 = arith.maximumf %29, %30 : vector<128x128xf32>
    %32 = arith.truncf %31 : vector<128x128xf32> to vector<128x128xbf16>
    %c0_24 = arith.constant 0 : index
    %c0_25 = arith.constant 0 : index
    %33 = vector.load %arg10[%c0_24, %c0_25] : memref<128x128xbf16, #tpu.memory_space<vmem>>, vector<128x128xbf16>
    %cst_26 = arith.constant dense<0.000000e+00> : vector<128x128xf32>
    %34 = tpu.matmul %32, %33, %cst_26 {dimension_numbers = #tpu.dot_dimension_numbers<[1], [0], [0], [1], [0, 0, 1, 1], [], []>} : vector<128x128xbf16>, vector<128x128xbf16>, vector<128x128xf32> -> vector<128x128xf32>
    %c0_27 = arith.constant 0 : index
    %c0_28 = arith.constant 0 : index
    %35 = vector.load %arg11[%c0_27, %c0_28] : memref<1x128xf32, #tpu.memory_space<vmem>>, vector<1x128xf32>
    %36 = vector.broadcast %35 : vector<1x128xf32> to vector<128x128xf32>
    %37 = arith.addf %34, %36 : vector<128x128xf32>
    %c0_29 = arith.constant 0 : index
    %c0_30 = arith.constant 0 : index
    %38 = vector.load %arg12[%c0_29, %c0_30] : memref<128x128xf32, #tpu.memory_space<vmem>>, vector<128x128xf32>
    tpu.vector_store %arg12[%c0_29, %c0_30], %37 {strides = array<i32>} : memref<128x128xf32, #tpu.memory_space<vmem>>, vector<128x128xf32>,
    return
  }
  func.func @transform_0(%arg0: i32) -> (i32, i32) {
    %c0_i32 = arith.constant 0 : i32
    %c0_i32_0 = arith.constant 0 : i32
    return %arg0, %c0_i32 : i32, i32
  }
  func.func @transform_1(%arg0: i32) -> (i32, i32) {
    %c0_i32 = arith.constant 0 : i32
    %c0_i32_0 = arith.constant 0 : i32
    %c0_i32_1 = arith.constant 0 : i32
    return %c0_i32, %c0_i32_0 : i32, i32
  }
  func.func @transform_2(%arg0: i32) -> (i32, i32) {
    %c0_i32 = arith.constant 0 : i32
    %c0_i32_0 = arith.constant 0 : i32
    %c0_i32_1 = arith.constant 0 : i32
    return %c0_i32, %c0_i32_0 : i32, i32
  }
  func.func @transform_3(%arg0: i32) -> (i32, i32) {
    %c0_i32 = arith.constant 0 : i32
    %c0_i32_0 = arith.constant 0 : i32
    %c0_i32_1 = arith.constant 0 : i32
    return %c0_i32, %c0_i32_0 : i32, i32
  }
  func.func @transform_4(%arg0: i32) -> (i32, i32) {
    %c0_i32 = arith.constant 0 : i32
    %c0_i32_0 = arith.constant 0 : i32
    %c0_i32_1 = arith.constant 0 : i32
    return %c0_i32, %c0_i32_0 : i32, i32
  }
  func.func @transform_5(%arg0: i32) -> (i32, i32) {
    %c0_i32 = arith.constant 0 : i32
    %c0_i32_0 = arith.constant 0 : i32
    %c0_i32_1 = arith.constant 0 : i32
    return %c0_i32, %c0_i32_0 : i32, i32
  }
  func.func @transform_6(%arg0: i32) -> (i32, i32) {
    %c0_i32 = arith.constant 0 : i32
    %c0_i32_0 = arith.constant 0 : i32
    %c0_i32_1 = arith.constant 0 : i32
    return %c0_i32, %c0_i32_0 : i32, i32
  }
  func.func @transform_7(%arg0: i32) -> (i32, i32) {
    %c0_i32 = arith.constant 0 : i32
    %c0_i32_0 = arith.constant 0 : i32
    %c0_i32_1 = arith.constant 0 : i32
    return %c0_i32, %c0_i32_0 : i32, i32
  }
  func.func @transform_8(%arg0: i32) -> (i32, i32) {
    %c0_i32 = arith.constant 0 : i32
    %c0_i32_0 = arith.constant 0 : i32
    %c0_i32_1 = arith.constant 0 : i32
    return %c0_i32, %c0_i32_0 : i32, i32
  }
  func.func @transform_9(%arg0: i32) -> (i32, i32) {
    %c0_i32 = arith.constant 0 : i32
    %c0_i32_0 = arith.constant 0 : i32
    %c0_i32_1 = arith.constant 0 : i32
    return %c0_i32, %c0_i32_0 : i32, i32
  }
  func.func @transform_10(%arg0: i32) -> (i32, i32) {
    %c0_i32 = arith.constant 0 : i32
    %c0_i32_0 = arith.constant 0 : i32
    %c0_i32_1 = arith.constant 0 : i32
    return %c0_i32, %c0_i32_0 : i32, i32
  }
  func.func @transform_11(%arg0: i32) -> (i32, i32) {
    %c0_i32 = arith.constant 0 : i32
    %c0_i32_0 = arith.constant 0 : i32
    return %arg0, %c0_i32 : i32, i32
  }
}

</mosaic_0001>

<llo_original>
// kernel: _forward_impl.1
$region0: #{_forward_impl.1}
  #allocation0 [shape = 'u32[]', space=smem, size = 0x4, offset = 0x4, fixed_abs, tag = 'smem constant byte address 0x4 - core index']
  #allocation1 [shape = 'u32[144,128]{1,0:T(1,128)}', space=vmem, size = 0x12000, scoped, tag = 'internal scratch']
  %s0 = inlined_call_operand.vmem [shape: bf16[256,32], index: 0, kind: input, shape index: {}]
  %s1 = inlined_call_operand.hbm [shape: bf16[32,256], index: 1, kind: input, shape index: {}]
  %s2 = inlined_call_operand.vmem [shape: f32[1,256], index: 2, kind: input, shape index: {}]
  %s3 = inlined_call_operand.vmem [shape: bf16[256,128], index: 3, kind: input, shape index: {}]
  %s4 = inlined_call_operand.vmem [shape: f32[1,128], index: 4, kind: input, shape index: {}]
  %s5 = inlined_call_operand.vmem [shape: bf16[128,128], index: 5, kind: input, shape index: {}]
  %s6 = inlined_call_operand.vmem [shape: f32[1,128], index: 6, kind: input, shape index: {}]
  %s7 = inlined_call_operand.vmem [shape: bf16[128,128], index: 7, kind: input, shape index: {}]
  %s8 = inlined_call_operand.vmem [shape: f32[1,128], index: 8, kind: input, shape index: {}]
  %s9 = inlined_call_operand.hbm [shape: bf16[128,128], index: 9, kind: input, shape index: {}]
  %s10 = inlined_call_operand.vmem [shape: f32[1,128], index: 10, kind: input, shape index: {}]
  %s11 = inlined_call_operand.vmem [shape: f32[256,128], index: 11, kind: output, shape index: {}]
  %s12 = sld [smem:[#allocation0]]
  $region85: #{_forward_impl.1} parent=0
    _
  %s14 = ssub.s32 1, %s12
  %s15 = scalar_select 0, %s14, %s12
  $region1: #{_forward_impl.1} parent=0
    #allocation2 [shape = 'u8[16384]{0}', space=vmem, size = 0x4000, scoped, tag = 'input window, operand 1, single buffered']
    #allocation3 [shape = 's32[2]{0}', space=sflag, size = 0x8, scoped, tag = 'scoped memory for _forward_impl.1']
    #allocation4 [shape = 'u8[32768]{0}', space=vmem, size = 0x8000, scoped, tag = 'input window, operand 9, single buffered']
    #allocation5 [shape = 's32[1]{0}', space=sflag, size = 0x4, scoped, tag = 'scoped memory for _forward_impl.1']
    %16 = vsyncpa [#allocation3], 0
    %17 = vsyncpa [#allocation5], 0
    loop: start=0, step=1, limit=4
    $region2: #{_forward_impl.1} parent=1 // loop_pre_header
      _
    $region3: #{_forward_impl.1} parent=1 // loop_header
      %s19 = sphi 0, %s23
      %p20 = scmp.ge.s32.totalorder %s19, 4
      %s29 = sphi 0, %s31
      %s32 = sphi 0, %s29
      %s33 = sphi 0, %s32
      %s49 = sphi 0, %s33
      %s53 = sphi 0, %s53
      %s55 = sphi 0, %s53
      %s56 = sphi 0, %s55
      %s70 = sphi 0, %s56
      %s74 = sphi 0, %s74
      %s76 = sphi 0, %s74
      %s77 = sphi 0, %s76
      %s91 = sphi 0, %s77
      %s95 = sphi 0, %s95
      %s97 = sphi 0, %s95
      %s98 = sphi 0, %s97
      %s112 = sphi 0, %s98
      %s116 = sphi 0, %s116
      %s118 = sphi 0, %s116
      %s119 = sphi 0, %s118
      %s133 = sphi 0, %s119
      %s137 = sphi 0, %s137
      %s139 = sphi 0, %s137
      %s140 = sphi 0, %s139
      %s154 = sphi 0, %s140
      %s158 = sphi 0, %s158
      %s160 = sphi 0, %s158
      %s161 = sphi 0, %s160
      %s175 = sphi 0, %s161
      %s179 = sphi 0, %s179
      %s181 = sphi 0, %s179
      %s182 = sphi 0, %s181
      %s196 = sphi 0, %s182
      %s200 = sphi 0, %s200
      %s202 = sphi 0, %s200
      %s203 = sphi 0, %s202
      %s217 = sphi 0, %s203
      %s221 = sphi 0, %s221
      %s223 = sphi 0, %s221
      %s224 = sphi 0, %s223
      %s238 = sphi 0, %s224
      %s242 = sphi 0, %s242
      %s244 = sphi 0, %s242
      %s245 = sphi 0, %s244
      %s259 = sphi 0, %s245
      %s265 = sphi 0, %s267
      %s268 = sphi 0, %s265
      %s269 = sphi 0, %s268
      %s285 = sphi 0, %s269
    $region4: #{_forward_impl.1} parent=1 // loop_header_branch
      %22 = sbr.rel (%p20) target = $region8
    $region5: #{_forward_impl.1} parent=1 // loop_body
      %s24 = ssub.s32 %s19, 1
      %s25 = ssub.s32 %s19, 2
      %s26 = sadd.s32 %s19, 1
      %s27 = ssub.s32 %s19, %s26
      %p28 = scmp.eq.s32.totalorder %s27, 0
      %s30 = sadd.s32 %s29, 1
      %s31 = scalar_select %p28, %s29, %s30
      %p34 = pneg %p28
      %p35 = scmp.eq.s32.totalorder %s19, 1
      %p36 = por %p34, %p35
      %p37 = scmp.ne.s32.totalorder %s29, %s32
      %p38 = scmp.eq.s32.totalorder %s19, 0
      %p39 = por %p37, %p38
      %p40 = scmp.ne.s32.totalorder %s29, %s32
      %p41 = scmp.eq.s32.totalorder %s24, 1
      %p42 = por %p40, %p41
      %p43 = scmp.ne.s32.totalorder %s32, %s33
      %p44 = scmp.eq.s32.totalorder %s24, 0
      %p45 = por %p43, %p44
      %p46 = scmp.ne.s32.totalorder %s32, %s33
      %p47 = scmp.eq.s32.totalorder %s25, 1
      %p48 = por %p46, %p47
      %p50 = scmp.ne.s32.totalorder %s33, %s49
      %p51 = scmp.eq.s32.totalorder %s25, 0
      %p52 = por %p50, %p51
      %s54 = sadd.s32 %s53, 1
      %p57 = scmp.eq.s32.totalorder %s19, 1
      %p58 = scmp.ne.s32.totalorder %s53, %s55
      %p59 = scmp.eq.s32.totalorder %s19, 0
      %p60 = por %p58, %p59
      %p61 = scmp.ne.s32.totalorder %s53, %s55
      %p62 = scmp.eq.s32.totalorder %s24, 1
      %p63 = por %p61, %p62
      %p64 = scmp.ne.s32.totalorder %s55, %s56
      %p65 = scmp.eq.s32.totalorder %s24, 0
      %p66 = por %p64, %p65
      %p67 = scmp.ne.s32.totalorder %s55, %s56
      %p68 = scmp.eq.s32.totalorder %s25, 1
      %p69 = por %p67, %p68
      %p71 = scmp.ne.s32.totalorder %s56, %s70
      %p72 = scmp.eq.s32.totalorder %s25, 0
      %p73 = por %p71, %p72
      %s75 = sadd.s32 %s74, 1
      %p78 = scmp.eq.s32.totalorder %s19, 1
      %p79 = scmp.ne.s32.totalorder %s74, %s76
      %p80 = scmp.eq.s32.totalorder %s19, 0
      %p81 = por %p79, %p80
      %p82 = scmp.ne.s32.totalorder %s74, %s76
      %p83 = scmp.eq.s32.totalorder %s24, 1
      %p84 = por %p82, %p83
      %p85 = scmp.ne.s32.totalorder %s76, %s77
      %p86 = scmp.eq.s32.totalorder %s24, 0
      %p87 = por %p85, %p86
      %p88 = scmp.ne.s32.totalorder %s76, %s77
      %p89 = scmp.eq.s32.totalorder %s25, 1
      %p90 = por %p88, %p89
      %p92 = scmp.ne.s32.totalorder %s77, %s91
      %p93 = scmp.eq.s32.totalorder %s25, 0
      %p94 = por %p92, %p93
      %s96 = sadd.s32 %s95, 1
      %p99 = scmp.eq.s32.totalorder %s19, 1
      %p100 = scmp.ne.s32.totalorder %s95, %s97
      %p101 = scmp.eq.s32.totalorder %s19, 0
      %p102 = por %p100, %p101
      %p103 = scmp.ne.s32.totalorder %s95, %s97
      %p104 = scmp.eq.s32.totalorder %s24, 1
      %p105 = por %p103, %p104
      %p106 = scmp.ne.s32.totalorder %s97, %s98
      %p107 = scmp.eq.s32.totalorder %s24, 0
      %p108 = por %p106, %p107
      %p109 = scmp.ne.s32.totalorder %s97, %s98
      %p110 = scmp.eq.s32.totalorder %s25, 1
      %p111 = por %p109, %p110
      %p113 = scmp.ne.s32.totalorder %s98, %s112
      %p114 = scmp.eq.s32.totalorder %s25, 0
      %p115 = por %p113, %p114
      %s117 = sadd.s32 %s116, 1
      %p120 = scmp.eq.s32.totalorder %s19, 1
      %p121 = scmp.ne.s32.totalorder %s116, %s118
      %p122 = scmp.eq.s32.totalorder %s19, 0
      %p123 = por %p121, %p122
      %p124 = scmp.ne.s32.totalorder %s116, %s118
      %p125 = scmp.eq.s32.totalorder %s24, 1
      %p126 = por %p124, %p125
      %p127 = scmp.ne.s32.totalorder %s118, %s119
      %p128 = scmp.eq.s32.totalorder %s24, 0
      %p129 = por %p127, %p128
      %p130 = scmp.ne.s32.totalorder %s118, %s119
      %p131 = scmp.eq.s32.totalorder %s25, 1
      %p132 = por %p130, %p131
      %p134 = scmp.ne.s32.totalorder %s119, %s133
      %p135 = scmp.eq.s32.totalorder %s25, 0
      %p136 = por %p134, %p135
      %s138 = sadd.s32 %s137, 1
      %p141 = scmp.eq.s32.totalorder %s19, 1
      %p142 = scmp.ne.s32.totalorder %s137, %s139
      %p143 = scmp.eq.s32.totalorder %s19, 0
      %p144 = por %p142, %p143
      %p145 = scmp.ne.s32.totalorder %s137, %s139
      %p146 = scmp.eq.s32.totalorder %s24, 1
      %p147 = por %p145, %p146
      %p148 = scmp.ne.s32.totalorder %s139, %s140
      %p149 = scmp.eq.s32.totalorder %s24, 0
      %p150 = por %p148, %p149
      %p151 = scmp.ne.s32.totalorder %s139, %s140
      %p152 = scmp.eq.s32.totalorder %s25, 1
      %p153 = por %p151, %p152
      %p155 = scmp.ne.s32.totalorder %s140, %s154
      %p156 = scmp.eq.s32.totalorder %s25, 0
      %p157 = por %p155, %p156
      %s159 = sadd.s32 %s158, 1
      %p162 = scmp.eq.s32.totalorder %s19, 1
      %p163 = scmp.ne.s32.totalorder %s158, %s160
      %p164 = scmp.eq.s32.totalorder %s19, 0
      %p165 = por %p163, %p164
      %p166 = scmp.ne.s32.totalorder %s158, %s160
      %p167 = scmp.eq.s32.totalorder %s24, 1
      %p168 = por %p166, %p167
      %p169 = scmp.ne.s32.totalorder %s160, %s161
      %p170 = scmp.eq.s32.totalorder %s24, 0
      %p171 = por %p169, %p170
      %p172 = scmp.ne.s32.totalorder %s160, %s161
      %p173 = scmp.eq.s32.totalorder %s25, 1
      %p174 = por %p172, %p173
      %p176 = scmp.ne.s32.totalorder %s161, %s175
      %p177 = scmp.eq.s32.totalorder %s25, 0
      %p178 = por %p176, %p177
      %s180 = sadd.s32 %s179, 1
      %p183 = scmp.eq.s32.totalorder %s19, 1
      %p184 = scmp.ne.s32.totalorder %s179, %s181
      %p185 = scmp.eq.s32.totalorder %s19, 0
      %p186 = por %p184, %p185
      %p187 = scmp.ne.s32.totalorder %s179, %s181
      %p188 = scmp.eq.s32.totalorder %s24, 1
      %p189 = por %p187, %p188
      %p190 = scmp.ne.s32.totalorder %s181, %s182
      %p191 = scmp.eq.s32.totalorder %s24, 0
      %p192 = por %p190, %p191
      %p193 = scmp.ne.s32.totalorder %s181, %s182
      %p194 = scmp.eq.s32.totalorder %s25, 1
      %p195 = por %p193, %p194
      %p197 = scmp.ne.s32.totalorder %s182, %s196
      %p198 = scmp.eq.s32.totalorder %s25, 0
      %p199 = por %p197, %p198
      %s201 = sadd.s32 %s200, 1
      %p204 = scmp.eq.s32.totalorder %s19, 1
      %p205 = scmp.ne.s32.totalorder %s200, %s202
      %p206 = scmp.eq.s32.totalorder %s19, 0
      %p207 = por %p205, %p206
      %p208 = scmp.ne.s32.totalorder %s200, %s202
      %p209 = scmp.eq.s32.totalorder %s24, 1
      %p210 = por %p208, %p209
      %p211 = scmp.ne.s32.totalorder %s202, %s203
      %p212 = scmp.eq.s32.totalorder %s24, 0
      %p213 = por %p211, %p212
      %p214 = scmp.ne.s32.totalorder %s202, %s203
      %p215 = scmp.eq.s32.totalorder %s25, 1
      %p216 = por %p214, %p215
      %p218 = scmp.ne.s32.totalorder %s203, %s217
      %p219 = scmp.eq.s32.totalorder %s25, 0
      %p220 = por %p218, %p219
      %s222 = sadd.s32 %s221, 1
      %p225 = scmp.eq.s32.totalorder %s19, 1
      %p226 = scmp.ne.s32.totalorder %s221, %s223
      %p227 = scmp.eq.s32.totalorder %s19, 0
      %p228 = por %p226, %p227
      %p229 = scmp.ne.s32.totalorder %s221, %s223
      %p230 = scmp.eq.s32.totalorder %s24, 1
      %p231 = por %p229, %p230
      %p232 = scmp.ne.s32.totalorder %s223, %s224
      %p233 = scmp.eq.s32.totalorder %s24, 0
      %p234 = por %p232, %p233
      %p235 = scmp.ne.s32.totalorder %s223, %s224
      %p236 = scmp.eq.s32.totalorder %s25, 1
      %p237 = por %p235, %p236
      %p239 = scmp.ne.s32.totalorder %s224, %s238
      %p240 = scmp.eq.s32.totalorder %s25, 0
      %p241 = por %p239, %p240
      %s243 = sadd.s32 %s242, 1
      %p246 = scmp.eq.s32.totalorder %s19, 1
      %p247 = scmp.ne.s32.totalorder %s242, %s244
      %p248 = scmp.eq.s32.totalorder %s19, 0
      %p249 = por %p247, %p248
      %p250 = scmp.ne.s32.totalorder %s242, %s244
      %p251 = scmp.eq.s32.totalorder %s24, 1
      %p252 = por %p250, %p251
      %p253 = scmp.ne.s32.totalorder %s244, %s245
      %p254 = scmp.eq.s32.totalorder %s24, 0
      %p255 = por %p253, %p254
      %p256 = scmp.ne.s32.totalorder %s244, %s245
      %p257 = scmp.eq.s32.totalorder %s25, 1
      %p258 = por %p256, %p257
      %p260 = scmp.ne.s32.totalorder %s245, %s259
      %p261 = scmp.eq.s32.totalorder %s25, 0
      %p262 = por %p260, %p261
      %s263 = ssub.s32 %s19, %s26
      %p264 = scmp.eq.s32.totalorder %s263, 0
      %s266 = sadd.s32 %s265, 1
      %s267 = scalar_select %p264, %s265, %s266
      %p270 = pneg %p264
      %p271 = scmp.eq.s32.totalorder %s19, 1
      %p272 = por %p270, %p271
      %p273 = scmp.ne.s32.totalorder %s265, %s268
      %p274 = scmp.eq.s32.totalorder %s19, 0
      %p275 = por %p273, %p274
      %p276 = scmp.ne.s32.totalorder %s265, %s268
      %p277 = scmp.eq.s32.totalorder %s24, 1
      %p278 = por %p276, %p277
      %p279 = scmp.ne.s32.totalorder %s268, %s269
      %p280 = scmp.eq.s32.totalorder %s24, 0
      %p281 = por %p279, %p280
      %p282 = scmp.ne.s32.totalorder %s268, %s269
      %p283 = scmp.eq.s32.totalorder %s25, 1
      %p284 = por %p282, %p283
      %p286 = scmp.ne.s32.totalorder %s269, %s285
      %p287 = scmp.eq.s32.totalorder %s25, 0
      %p288 = por %p286, %p287
      %p289 = scmp.le.s32.totalorder 1, %s19
      %p290 = scmp.lt.s32.totalorder %s19, 3
      %p291 = pnand %p289, %p290
      %p292 = pneg %p291
      // Predicated region
      $region9: #{_forward_impl.1} parent=5 // pred_check
        _
      $region10: #{_forward_impl.1} parent=5 // pred_check_branch
        %294 = sbr.rel (%p291) target = $region12
      $region11: #{_forward_impl.1} parent=5 // pred_region
        %s295 = ssub.s32 %s19, 1
        // Predicated region
        $region13: #{_forward_impl.1} parent=11 // pred_check
          %p296 = pneg %p66
        $region14: #{_forward_impl.1} parent=11 // pred_check_branch
          %298 = sbr.rel (%p296) target = $region16
        $region15: #{_forward_impl.1} parent=11 // pred_region
          %s300 = ssub.s32 512, 512
          %301 = vsyncadd [#allocation3], %s300
          %s302 = sshll.u32 [#allocation2], 4
          %s303 = int_to_ptr.vmem [resolvable:$true] %s302
          %308 = dma.hbm_to_vmem [thread:$0]  %s1, 512, %s303, [#allocation3], 128, 128, 8
        $region16: #{_forward_impl.1} parent=11 // pred_fallthru
          _
        // Predicated region
        $region17: #{_forward_impl.1} parent=11 // pred_check
          %p309 = pneg %p87
        $region18: #{_forward_impl.1} parent=11 // pred_check_branch
          %311 = sbr.rel (%p309) target = $region20
        $region19: #{_forward_impl.1} parent=11 // pred_region
          _
        $region20: #{_forward_impl.1} parent=11 // pred_fallthru
          _
        // Predicated region
        $region21: #{_forward_impl.1} parent=11 // pred_check
          %p312 = pneg %p108
        $region22: #{_forward_impl.1} parent=11 // pred_check_branch
          %314 = sbr.rel (%p312) target = $region24
        $region23: #{_forward_impl.1} parent=11 // pred_region
          _
        $region24: #{_forward_impl.1} parent=11 // pred_fallthru
          _
        // Predicated region
        $region25: #{_forward_impl.1} parent=11 // pred_check
          %p315 = pneg %p129
        $region26: #{_forward_impl.1} parent=11 // pred_check_branch
          %317 = sbr.rel (%p315) target = $region28
        $region27: #{_forward_impl.1} parent=11 // pred_region
          _
        $region28: #{_forward_impl.1} parent=11 // pred_fallthru
          _
        // Predicated region
        $region29: #{_forward_impl.1} parent=11 // pred_check
          %p318 = pneg %p150
        $region30: #{_forward_impl.1} parent=11 // pred_check_branch
          %320 = sbr.rel (%p318) target = $region32
        $region31: #{_forward_impl.1} parent=11 // pred_region
          _
        $region32: #{_forward_impl.1} parent=11 // pred_fallthru
          _
        // Predicated region
        $region33: #{_forward_impl.1} parent=11 // pred_check
          %p321 = pneg %p171
        $region34: #{_forward_impl.1} parent=11 // pred_check_branch
          %323 = sbr.rel (%p321) target = $region36
        $region35: #{_forward_impl.1} parent=11 // pred_region
          _
        $region36: #{_forward_impl.1} parent=11 // pred_fallthru
          _
        // Predicated region
        $region37: #{_forward_impl.1} parent=11 // pred_check
          %p324 = pneg %p192
        $region38: #{_forward_impl.1} parent=11 // pred_check_branch
          %326 = sbr.rel (%p324) target = $region40
        $region39: #{_forward_impl.1} parent=11 // pred_region
          _
        $region40: #{_forward_impl.1} parent=11 // pred_fallthru
          _
        // Predicated region
        $region41: #{_forward_impl.1} parent=11 // pred_check
          %p327 = pneg %p213
        $region42: #{_forward_impl.1} parent=11 // pred_check_branch
          %329 = sbr.rel (%p327) target = $region44
        $region43: #{_forward_impl.1} parent=11 // pred_region
          _
        $region44: #{_forward_impl.1} parent=11 // pred_fallthru
          _
        // Predicated region
        $region45: #{_forward_impl.1} parent=11 // pred_check
          %p330 = pneg %p234
        $region46: #{_forward_impl.1} parent=11 // pred_check_branch
          %332 = sbr.rel (%p330) target = $region48
        $region47: #{_forward_impl.1} parent=11 // pred_region
          %s334 = ssub.s32 1024, 1024
          %335 = vsyncadd [#allocation5], %s334
          %s336 = sshll.u32 [#allocation4], 4
          %s337 = int_to_ptr.vmem [resolvable:$true] %s336
          %342 = dma.hbm_to_vmem [thread:$0]  %s9, 1024, %s337, [#allocation5], 64, 64, 4
        $region48: #{_forward_impl.1} parent=11 // pred_fallthru
          _
        // Predicated region
        $region49: #{_forward_impl.1} parent=11 // pred_check
          %p343 = pneg %p255
        $region50: #{_forward_impl.1} parent=11 // pred_check_branch
          %345 = sbr.rel (%p343) target = $region52
        $region51: #{_forward_impl.1} parent=11 // pred_region
          _
        $region52: #{_forward_impl.1} parent=11 // pred_fallthru
          _
      $region12: #{_forward_impl.1} parent=5 // pred_fallthru
        _
      %p346 = scmp.lt.s32.totalorder %s19, 2
      // Predicated region
      $region53: #{_forward_impl.1} parent=5 // pred_check
        %p347 = pneg %p346
      $region54: #{_forward_impl.1} parent=5 // pred_check_branch
        %349 = sbr.rel (%p347) target = $region56
      $region55: #{_forward_impl.1} parent=5 // pred_region
        // Predicated region
        $region57: #{_forward_impl.1} parent=55 // pred_check
          %p350 = pneg %p39
        $region58: #{_forward_impl.1} parent=55 // pred_check_branch
          %352 = sbr.rel (%p350) target = $region60
        $region59: #{_forward_impl.1} parent=55 // pred_region
          %s353 = smul.u32 16, %s19
          %p354 = scmp.lt.s32.totalorder %s353, 31
          %s355 = scalar_select %p354, %s353, 31
          %s356 = smul.addr %s355, 4
          %s357 = scalar_lea.vmem %s0, %s356
          %s358 = smul.u32 16, %s19
        $region60: #{_forward_impl.1} parent=55 // pred_fallthru
          _
      $region56: #{_forward_impl.1} parent=5 // pred_fallthru
        _
      %p359 = scmp.le.s32.totalorder 1, %s19
      %p360 = scmp.lt.s32.totalorder %s19, 3
      %p361 = pnand %p359, %p360
      %p362 = pneg %p361
      // Predicated region
      $region61: #{_forward_impl.1} parent=5 // pred_check
        _
      $region62: #{_forward_impl.1} parent=5 // pred_check_branch
        %364 = sbr.rel (%p361) target = $region64
      $region63: #{_forward_impl.1} parent=5 // pred_region
        %s365 = ssub.s32 %s19, 1
        // Predicated region
        $region65: #{_forward_impl.1} parent=63 // pred_check
          %p366 = pneg %p66
        $region66: #{_forward_impl.1} parent=63 // pred_check_branch
          %368 = sbr.rel (%p366) target = $region68
        $region67: #{_forward_impl.1} parent=63 // pred_region
          %369 = dma.done [#allocation3], 512
        $region68: #{_forward_impl.1} parent=63 // pred_fallthru
          _
        // Predicated region
        $region69: #{_forward_impl.1} parent=63 // pred_check
          %p370 = pneg %p234
        $region70: #{_forward_impl.1} parent=63 // pred_check_branch
          %372 = sbr.rel (%p370) target = $region72
        $region71: #{_forward_impl.1} parent=63 // pred_region
          %373 = dma.done [#allocation5], 1024
        $region72: #{_forward_impl.1} parent=63 // pred_fallthru
          _
        %s374 = smul.u32 16, %s24
        %p375 = scmp.lt.s32.totalorder %s374, 31
        %s376 = scalar_select %p375, %s374, 31
        %s377 = smul.addr %s376, 4
        %s378 = scalar_lea.vmem %s0, %s377
        %p379 = pneg %p45
        %p380 = pneg %p42
        %p381 = pneg %p66
        %p382 = pneg %p63
        %p383 = pneg %p87
        %p384 = pneg %p84
        %p385 = pneg %p108
        %p386 = pneg %p105
        %p387 = pneg %p129
        %p388 = pneg %p126
        %p389 = pneg %p150
        %p390 = pneg %p147
        %p391 = pneg %p171
        %p392 = pneg %p168
        %p393 = pneg %p192
        %p394 = pneg %p189
        %p395 = pneg %p213
        %p396 = pneg %p210
        %p397 = pneg %p234
        %p398 = pneg %p231
        %p399 = pneg %p255
        %p400 = pneg %p252
        %p401 = pneg %p281
        %p402 = pneg %p278
        %s403 = smul.u32 16, %s24
        %p404 = scmp.lt.s32.totalorder %s403, 31
        %s405 = scalar_select %p404, %s403, 31
        %s406 = smul.addr %s405, 8
        %s407 = scalar_lea.vmem %s11, %s406
        %s408 = smul.u32 16, %s24
        %p409 = scmp.lt.s32.totalorder %s408, 31
        %s410 = scalar_select %p409, %s408, 31
        %s411 = smul.addr %s410, 4
        %s412 = scalar_lea.vmem %s0, %s411
        %s413 = smul.u32 16, %s24
        %s414 = smul.u32 16, %s24
        %p415 = scmp.lt.s32.totalorder %s414, 31
        %s416 = scalar_select %p415, %s414, 31
        %s417 = smul.addr %s416, 8
        %s418 = scalar_lea.vmem %s11, %s417
        %s419 = smul.u32 16, %s24
        %v421 = vld [vmem:[%s412] sm:$0xf]
        %v422 = vld [vmem:[%s412 + $0x4] sm:$0xf]
        %v423 = vld [vmem:[%s412 + $0x8] sm:$0xf]
        %v424 = vld [vmem:[%s412 + $0xc] sm:$0xf]
        %v425 = vld [vmem:[%s412 + $0x10] sm:$0xf]
        %v426 = vld [vmem:[%s412 + $0x14] sm:$0xf]
        %v427 = vld [vmem:[%s412 + $0x18] sm:$0xf]
        %v428 = vld [vmem:[%s412 + $0x1c] sm:$0xf]
        %v429 = vld [vmem:[%s412 + $0x20] sm:$0xf]
        %v430 = vld [vmem:[%s412 + $0x24] sm:$0xf]
        %v431 = vld [vmem:[%s412 + $0x28] sm:$0xf]
        %v432 = vld [vmem:[%s412 + $0x2c] sm:$0xf]
        %v433 = vld [vmem:[%s412 + $0x30] sm:$0xf]
        %v434 = vld [vmem:[%s412 + $0x34] sm:$0xf]
        %v435 = vld [vmem:[%s412 + $0x38] sm:$0xf]
        %v436 = vld [vmem:[%s412 + $0x3c] sm:$0xf]
        %v437 = vld [vmem:[#allocation2] sm:$0xff]
        %v438 = vld [vmem:[#allocation2 + $0x8] sm:$0xff]
        %v439 = vld [vmem:[#allocation2 + $0x10] sm:$0xff]
        %v440 = vld [vmem:[#allocation2 + $0x18] sm:$0xff]
        %v441 = vld [vmem:[%s2] sm:$0x3]
        %v443 = vlaneseq
        %v444 = vshrl.u32 %v443, 7
        %v445 = vsub.s32 0, %v444
        %v446 = vrot.slane %v441, %v445
        %v447 = vlaneseq
        %v448 = vshrl.u32 %v447, 7
        %v449 = vsub.s32 1, %v448
        %v450 = vrot.slane %v441, %v449
        %v469 = vunpack.c.l.b16 %v421
        %v470 = vunpack.c.l.b16 %v422
        %v471 = vunpack.c.l.b16 %v423
        %v472 = vunpack.c.l.b16 %v424
        %v473 = vunpack.c.l.b16 %v425
        %v474 = vunpack.c.l.b16 %v426
        %v475 = vunpack.c.l.b16 %v427
        %v476 = vunpack.c.l.b16 %v428
        %v477 = vunpack.c.l.b16 %v429
        %v478 = vunpack.c.l.b16 %v430
        %v479 = vunpack.c.l.b16 %v431
        %v480 = vunpack.c.l.b16 %v432
        %v481 = vunpack.c.l.b16 %v433
        %v482 = vunpack.c.l.b16 %v434
        %v483 = vunpack.c.l.b16 %v435
        %v484 = vunpack.c.l.b16 %v436
        %v485 = vpack.c.b16 %v470, %v469
        %v486 = vpack.c.b16 %v472, %v471
        %v487 = vpack.c.b16 %v474, %v473
        %v488 = vpack.c.b16 %v476, %v475
        %v489 = vpack.c.b16 %v478, %v477
        %v490 = vpack.c.b16 %v480, %v479
        %v491 = vpack.c.b16 %v482, %v481
        %v492 = vpack.c.b16 %v484, %v483
        %v497 = vunpack.c.l.b16 %v437
        %v498 = vunpack.c.h.b16 %v437
        %v499 = vunpack.c.l.b16 %v438
        %v500 = vunpack.c.h.b16 %v438
        %v501 = vunpack.c.l.b16 %v439
        %v502 = vunpack.c.h.b16 %v439
        %v503 = vunpack.c.l.b16 %v440
        %v504 = vunpack.c.h.b16 %v440
        %v505 = vpack.c.b16 %v499, %v497
        %v506 = vpack.c.b16 %v500, %v498
        %v507 = vpack.c.b16 %v503, %v501
        %v508 = vpack.c.b16 %v504, %v502
        %vm513 = vcmask 261120
        %v515 = vsel %vm513, %v485, 0
        %v518 = vsel %vm513, %v486, 0
        %v521 = vsel %vm513, %v487, 0
        %v524 = vsel %vm513, %v488, 0
        %v527 = vsel %vm513, %v489, 0
        %v530 = vsel %vm513, %v490, 0
        %v533 = vsel %vm513, %v491, 0
        %v536 = vsel %vm513, %v492, 0
        %538 = vmatprep.subr.bf16.mxu0 %v506
        %539 = vmatpush1.bf16.msra.mxu0 %v505
        %540 = vmatprep.subr.bf16.mxu0 %v508
        %541 = vmatpush1.bf16.msra.mxu0 %v507
        %542 = vmatprep.subr.bf16.mxu0 0
        %543 = vmatpush1.bf16.msra.mxu0 0
        %544 = vmatprep.subr.bf16.mxu0 0
        %545 = vmatpush1.bf16.msra.mxu0 0
        %546 = vmatprep.subr.bf16.mxu0 0
        %547 = vmatpush1.bf16.msra.mxu0 0
        %548 = vmatprep.subr.bf16.mxu0 0
        %549 = vmatpush1.bf16.msra.mxu0 0
        %550 = vmatprep.subr.bf16.mxu0 0
        %551 = vmatpush1.bf16.msra.mxu0 0
        %552 = vmatprep.subr.bf16.mxu0 0
        %553 = vmatpush1.bf16.msra.mxu0 0
        %554 = vmatprep.subr.bf16.mxu0 0
        %555 = vmatpush1.bf16.msra.mxu0 0
        %556 = vmatprep.subr.bf16.mxu0 0
        %557 = vmatpush1.bf16.msra.mxu0 0
        %558 = vmatprep.subr.bf16.mxu0 0
        %559 = vmatpush1.bf16.msra.mxu0 0
        %560 = vmatprep.subr.bf16.mxu0 0
        %561 = vmatpush1.bf16.msra.mxu0 0
        %562 = vmatprep.subr.bf16.mxu0 0
        %563 = vmatpush1.bf16.msra.mxu0 0
        %564 = vmatprep.subr.bf16.mxu0 0
        %565 = vmatpush1.bf16.msra.mxu0 0
        %566 = vmatprep.subr.bf16.mxu0 0
        %567 = vmatpush1.bf16.msra.mxu0 0
        %568 = vmatprep.subr.bf16.mxu0 0
        %569 = vmatpush1.bf16.msra.mxu0 0
        %570 = vmatprep.mubr.bf16.mxu0 0
        %571 = vmatmul.mubr.bf16.gmra.mrb[0].mxu0 %v515
        %v572 = vpop.f32.mrb[0].mxu0
        %v573 = vadd.f32 %v446, %v572
        %v574 = vpop.f32.mrb[0].mxu0
        %v575 = vadd.f32 %v450, %v574
        %v576 = vpop.f32.mrb[0].mxu0
        %v577 = vadd.f32 %v446, %v576
        %v578 = vpop.f32.mrb[0].mxu0
        %v579 = vadd.f32 %v450, %v578
        %580 = vmatprep.mubr.bf16.mxu0 0
        %581 = vmatmul.mubr.bf16.gmra.mrb[0].mxu0 %v518
        %v582 = vpop.f32.mrb[0].mxu0
        %v583 = vadd.f32 %v446, %v582
        %v584 = vpop.f32.mrb[0].mxu0
        %v585 = vadd.f32 %v450, %v584
        %v586 = vpop.f32.mrb[0].mxu0
        %v587 = vadd.f32 %v446, %v586
        %v588 = vpop.f32.mrb[0].mxu0
        %v589 = vadd.f32 %v450, %v588
        %590 = vmatprep.mubr.bf16.mxu0 0
        %591 = vmatmul.mubr.bf16.gmra.mrb[0].mxu0 %v521
        %v592 = vpop.f32.mrb[0].mxu0
        %v593 = vadd.f32 %v446, %v592
        %v594 = vpop.f32.mrb[0].mxu0
        %v595 = vadd.f32 %v450, %v594
        %v596 = vpop.f32.mrb[0].mxu0
        %v597 = vadd.f32 %v446, %v596
        %v598 = vpop.f32.mrb[0].mxu0
        %v599 = vadd.f32 %v450, %v598
        %600 = vmatprep.mubr.bf16.mxu0 0
        %601 = vmatmul.mubr.bf16.gmra.mrb[0].mxu0 %v524
        %v602 = vpop.f32.mrb[0].mxu0
        %v603 = vadd.f32 %v446, %v602
        %v604 = vpop.f32.mrb[0].mxu0
        %v605 = vadd.f32 %v450, %v604
        %v606 = vpop.f32.mrb[0].mxu0
        %v607 = vadd.f32 %v446, %v606
        %v608 = vpop.f32.mrb[0].mxu0
        %v609 = vadd.f32 %v450, %v608
        %610 = vmatprep.mubr.bf16.mxu0 0
        %611 = vmatmul.mubr.bf16.gmra.mrb[0].mxu0 %v527
        %v612 = vpop.f32.mrb[0].mxu0
        %v613 = vadd.f32 %v446, %v612
        %v614 = vpop.f32.mrb[0].mxu0
        %v615 = vadd.f32 %v450, %v614
        %v616 = vpop.f32.mrb[0].mxu0
        %v617 = vadd.f32 %v446, %v616
        %v618 = vpop.f32.mrb[0].mxu0
        %v619 = vadd.f32 %v450, %v618
        %620 = vmatprep.mubr.bf16.mxu0 0
        %621 = vmatmul.mubr.bf16.gmra.mrb[0].mxu0 %v530
        %v622 = vpop.f32.mrb[0].mxu0
        %v623 = vadd.f32 %v446, %v622
        %v624 = vpop.f32.mrb[0].mxu0
        %v625 = vadd.f32 %v450, %v624
        %v626 = vpop.f32.mrb[0].mxu0
        %v627 = vadd.f32 %v446, %v626
        %v628 = vpop.f32.mrb[0].mxu0
        %v629 = vadd.f32 %v450, %v628
        %630 = vmatprep.mubr.bf16.mxu0 0
        %631 = vmatmul.mubr.bf16.gmra.mrb[0].mxu0 %v533
        %v632 = vpop.f32.mrb[0].mxu0
        %v633 = vadd.f32 %v446, %v632
        %v634 = vpop.f32.mrb[0].mxu0
        %v635 = vadd.f32 %v450, %v634
        %v636 = vpop.f32.mrb[0].mxu0
        %v637 = vadd.f32 %v446, %v636
        %v638 = vpop.f32.mrb[0].mxu0
        %v639 = vadd.f32 %v450, %v638
        %640 = vmatprep.mubr.bf16.mxu0 0
        %641 = vmatmul.mubr.bf16.gmra.mrb[0].mxu0 %v536
        %v642 = vpop.f32.mrb[0].mxu0
        %v643 = vadd.f32 %v446, %v642
        %v644 = vpop.f32.mrb[0].mxu0
        %v645 = vadd.f32 %v450, %v644
        %v646 = vpop.f32.mrb[0].mxu0
        %v647 = vadd.f32 %v446, %v646
        %v648 = vpop.f32.mrb[0].mxu0
        %v649 = vadd.f32 %v450, %v648
        %650 = vdwg.mxu0
        %v651 = vmax.f32 %v573, 0.0
        %v652 = vmax.f32 %v575, 0.0
        %v653 = vmax.f32 %v577, 0.0
        %v654 = vmax.f32 %v579, 0.0
        %v655 = vmax.f32 %v583, 0.0
        %v656 = vmax.f32 %v585, 0.0
        %v657 = vmax.f32 %v587, 0.0
        %v658 = vmax.f32 %v589, 0.0
        %v659 = vmax.f32 %v593, 0.0
        %v660 = vmax.f32 %v595, 0.0
        %v661 = vmax.f32 %v597, 0.0
        %v662 = vmax.f32 %v599, 0.0
        %v663 = vmax.f32 %v603, 0.0
        %v664 = vmax.f32 %v605, 0.0
        %v665 = vmax.f32 %v607, 0.0
        %v666 = vmax.f32 %v609, 0.0
        %v667 = vmax.f32 %v613, 0.0
        %v668 = vmax.f32 %v615, 0.0
        %v669 = vmax.f32 %v617, 0.0
        %v670 = vmax.f32 %v619, 0.0
        %v671 = vmax.f32 %v623, 0.0
        %v672 = vmax.f32 %v625, 0.0
        %v673 = vmax.f32 %v627, 0.0
        %v674 = vmax.f32 %v629, 0.0
        %v675 = vmax.f32 %v633, 0.0
        %v676 = vmax.f32 %v635, 0.0
        %v677 = vmax.f32 %v637, 0.0
        %v678 = vmax.f32 %v639, 0.0
        %v679 = vmax.f32 %v643, 0.0
        %v680 = vmax.f32 %v645, 0.0
        %v681 = vmax.f32 %v647, 0.0
        %v682 = vmax.f32 %v649, 0.0
        %v683 = vpack.c.bf16 %v653, %v651
        %v684 = vpack.c.bf16 %v654, %v652
        %v685 = vpack.c.bf16 %v657, %v655
        %v686 = vpack.c.bf16 %v658, %v656
        %v687 = vpack.c.bf16 %v661, %v659
        %v688 = vpack.c.bf16 %v662, %v660
        %v689 = vpack.c.bf16 %v665, %v663
        %v690 = vpack.c.bf16 %v666, %v664
        %v691 = vpack.c.bf16 %v669, %v667
        %v692 = vpack.c.bf16 %v670, %v668
        %v693 = vpack.c.bf16 %v673, %v671
        %v694 = vpack.c.bf16 %v674, %v672
        %v695 = vpack.c.bf16 %v677, %v675
        %v696 = vpack.c.bf16 %v678, %v676
        %v697 = vpack.c.bf16 %v681, %v679
        %v698 = vpack.c.bf16 %v682, %v680
        %v699 = vld [vmem:[%s3] sm:$0xf]
        %v700 = vld [vmem:[%s3 + $0x4] sm:$0xf]
        %v701 = vld [vmem:[%s3 + $0x8] sm:$0xf]
        %v702 = vld [vmem:[%s3 + $0xc] sm:$0xf]
        %v703 = vld [vmem:[%s3 + $0x10] sm:$0xf]
        %v704 = vld [vmem:[%s3 + $0x14] sm:$0xf]
        %v705 = vld [vmem:[%s3 + $0x18] sm:$0xf]
        %v706 = vld [vmem:[%s3 + $0x1c] sm:$0xf]
        %v707 = vld [vmem:[%s3 + $0x20] sm:$0xf]
        %v708 = vld [vmem:[%s3 + $0x24] sm:$0xf]
        %v709 = vld [vmem:[%s3 + $0x28] sm:$0xf]
        %v710 = vld [vmem:[%s3 + $0x2c] sm:$0xf]
        %v711 = vld [vmem:[%s3 + $0x30] sm:$0xf]
        %v712 = vld [vmem:[%s3 + $0x34] sm:$0xf]
        %v713 = vld [vmem:[%s3 + $0x38] sm:$0xf]
        %v714 = vld [vmem:[%s3 + $0x3c] sm:$0xf]
        %v715 = vld [vmem:[%s3 + $0x40] sm:$0xf]
        %v716 = vld [vmem:[%s3 + $0x44] sm:$0xf]
        %v717 = vld [vmem:[%s3 + $0x48] sm:$0xf]
        %v718 = vld [vmem:[%s3 + $0x4c] sm:$0xf]
        %v719 = vld [vmem:[%s3 + $0x50] sm:$0xf]
        %v720 = vld [vmem:[%s3 + $0x54] sm:$0xf]
        %v721 = vld [vmem:[%s3 + $0x58] sm:$0xf]
        %v722 = vld [vmem:[%s3 + $0x5c] sm:$0xf]
        %v723 = vld [vmem:[%s3 + $0x60] sm:$0xf]
        %v724 = vld [vmem:[%s3 + $0x64] sm:$0xf]
        %v725 = vld [vmem:[%s3 + $0x68] sm:$0xf]
        %v726 = vld [vmem:[%s3 + $0x6c] sm:$0xf]
        %v727 = vld [vmem:[%s3 + $0x70] sm:$0xf]
        %v728 = vld [vmem:[%s3 + $0x74] sm:$0xf]
        %v729 = vld [vmem:[%s3 + $0x78] sm:$0xf]
        %v730 = vld [vmem:[%s3 + $0x7c] sm:$0xf]
        %v731 = vld [vmem:[%s4] sm:$0x1]
        %v733 = vlaneseq
        %v734 = vshrl.u32 %v733, 7
        %v735 = vsub.s32 0, %v734
        %v736 = vrot.slane %v731, %v735
        %v770 = vunpack.c.l.b16 %v699
        %v771 = vunpack.c.l.b16 %v700
        %v772 = vunpack.c.l.b16 %v701
        %v773 = vunpack.c.l.b16 %v702
        %v774 = vunpack.c.l.b16 %v703
        %v775 = vunpack.c.l.b16 %v704
        %v776 = vunpack.c.l.b16 %v705
        %v777 = vunpack.c.l.b16 %v706
        %v778 = vunpack.c.l.b16 %v707
        %v779 = vunpack.c.l.b16 %v708
        %v780 = vunpack.c.l.b16 %v709
        %v781 = vunpack.c.l.b16 %v710
        %v782 = vunpack.c.l.b16 %v711
        %v783 = vunpack.c.l.b16 %v712
        %v784 = vunpack.c.l.b16 %v713
        %v785 = vunpack.c.l.b16 %v714
        %v786 = vunpack.c.l.b16 %v715
        %v787 = vunpack.c.l.b16 %v716
        %v788 = vunpack.c.l.b16 %v717
        %v789 = vunpack.c.l.b16 %v718
        %v790 = vunpack.c.l.b16 %v719
        %v791 = vunpack.c.l.b16 %v720
        %v792 = vunpack.c.l.b16 %v721
        %v793 = vunpack.c.l.b16 %v722
        %v794 = vunpack.c.l.b16 %v723
        %v795 = vunpack.c.l.b16 %v724
        %v796 = vunpack.c.l.b16 %v725
        %v797 = vunpack.c.l.b16 %v726
        %v798 = vunpack.c.l.b16 %v727
        %v799 = vunpack.c.l.b16 %v728
        %v800 = vunpack.c.l.b16 %v729
        %v801 = vunpack.c.l.b16 %v730
        %v802 = vpack.c.b16 %v771, %v770
        %v803 = vpack.c.b16 %v773, %v772
        %v804 = vpack.c.b16 %v775, %v774
        %v805 = vpack.c.b16 %v777, %v776
        %v806 = vpack.c.b16 %v779, %v778
        %v807 = vpack.c.b16 %v781, %v780
        %v808 = vpack.c.b16 %v783, %v782
        %v809 = vpack.c.b16 %v785, %v784
        %v810 = vpack.c.b16 %v787, %v786
        %v811 = vpack.c.b16 %v789, %v788
        %v812 = vpack.c.b16 %v791, %v790
        %v813 = vpack.c.b16 %v793, %v792
        %v814 = vpack.c.b16 %v795, %v794
        %v815 = vpack.c.b16 %v797, %v796
        %v816 = vpack.c.b16 %v799, %v798
        %v817 = vpack.c.b16 %v801, %v800
        %834 = vmatprep.subr.bf16.mxu0 0
        %835 = vmatpush1.bf16.msra.mxu0 %v802
        %836 = vmatprep.subr.bf16.mxu0 0
        %837 = vmatpush1.bf16.msra.mxu0 %v803
        %838 = vmatprep.subr.bf16.mxu0 0
        %839 = vmatpush1.bf16.msra.mxu0 %v804
        %840 = vmatprep.subr.bf16.mxu0 0
        %841 = vmatpush1.bf16.msra.mxu0 %v805
        %842 = vmatprep.subr.bf16.mxu0 0
        %843 = vmatpush1.bf16.msra.mxu0 %v806
        %844 = vmatprep.subr.bf16.mxu0 0
        %845 = vmatpush1.bf16.msra.mxu0 %v807
        %846 = vmatprep.subr.bf16.mxu0 0
        %847 = vmatpush1.bf16.msra.mxu0 %v808
        %848 = vmatprep.subr.bf16.mxu0 0
        %849 = vmatpush1.bf16.msra.mxu0 %v809
        %850 = vmatprep.subr.bf16.mxu0 0
        %851 = vmatpush1.bf16.msra.mxu0 %v810
        %852 = vmatprep.subr.bf16.mxu0 0
        %853 = vmatpush1.bf16.msra.mxu0 %v811
        %854 = vmatprep.subr.bf16.mxu0 0
        %855 = vmatpush1.bf16.msra.mxu0 %v812
        %856 = vmatprep.subr.bf16.mxu0 0
        %857 = vmatpush1.bf16.msra.mxu0 %v813
        %858 = vmatprep.subr.bf16.mxu0 0
        %859 = vmatpush1.bf16.msra.mxu0 %v814
        %860 = vmatprep.subr.bf16.mxu0 0
        %861 = vmatpush1.bf16.msra.mxu0 %v815
        %862 = vmatprep.subr.bf16.mxu0 0
        %863 = vmatpush1.bf16.msra.mxu0 %v816
        %864 = vmatprep.subr.bf16.mxu0 0
        %865 = vmatpush1.bf16.msra.mxu0 %v817
        %866 = vmatprep.mubr.bf16.mxu0 %v684
        %867 = vmatmul.mubr.bf16.gmra.mrb[0].mxu0 %v683
        %v868 = vpop.f32.mrb[0].mxu0
        %v869 = vadd.f32 %v736, %v868
        %v870 = vpop.f32.mrb[0].mxu0
        %v871 = vpop.f32.mrb[0].mxu0
        %v872 = vadd.f32 %v736, %v871
        %v873 = vpop.f32.mrb[0].mxu0
        %874 = vmatprep.mubr.bf16.mxu0 %v686
        %875 = vmatmul.mubr.bf16.gmra.mrb[0].mxu0 %v685
        %v876 = vpop.f32.mrb[0].mxu0
        %v877 = vadd.f32 %v736, %v876
        %v878 = vpop.f32.mrb[0].mxu0
        %v879 = vpop.f32.mrb[0].mxu0
        %v880 = vadd.f32 %v736, %v879
        %v881 = vpop.f32.mrb[0].mxu0
        %882 = vmatprep.mubr.bf16.mxu0 %v688
        %883 = vmatmul.mubr.bf16.gmra.mrb[0].mxu0 %v687
        %v884 = vpop.f32.mrb[0].mxu0
        %v885 = vadd.f32 %v736, %v884
        %v886 = vpop.f32.mrb[0].mxu0
        %v887 = vpop.f32.mrb[0].mxu0
        %v888 = vadd.f32 %v736, %v887
        %v889 = vpop.f32.mrb[0].mxu0
        %890 = vmatprep.mubr.bf16.mxu0 %v690
        %891 = vmatmul.mubr.bf16.gmra.mrb[0].mxu0 %v689
        %v892 = vpop.f32.mrb[0].mxu0
        %v893 = vadd.f32 %v736, %v892
        %v894 = vpop.f32.mrb[0].mxu0
        %v895 = vpop.f32.mrb[0].mxu0
        %v896 = vadd.f32 %v736, %v895
        %v897 = vpop.f32.mrb[0].mxu0
        %898 = vmatprep.mubr.bf16.mxu0 %v692
        %899 = vmatmul.mubr.bf16.gmra.mrb[0].mxu0 %v691
        %v900 = vpop.f32.mrb[0].mxu0
        %v901 = vadd.f32 %v736, %v900
        %v902 = vpop.f32.mrb[0].mxu0
        %v903 = vpop.f32.mrb[0].mxu0
        %v904 = vadd.f32 %v736, %v903
        %v905 = vpop.f32.mrb[0].mxu0
        %906 = vmatprep.mubr.bf16.mxu0 %v694
        %907 = vmatmul.mubr.bf16.gmra.mrb[0].mxu0 %v693
        %v908 = vpop.f32.mrb[0].mxu0
        %v909 = vadd.f32 %v736, %v908
        %v910 = vpop.f32.mrb[0].mxu0
        %v911 = vpop.f32.mrb[0].mxu0
        %v912 = vadd.f32 %v736, %v911
        %v913 = vpop.f32.mrb[0].mxu0
        %914 = vmatprep.mubr.bf16.mxu0 %v696
        %915 = vmatmul.mubr.bf16.gmra.mrb[0].mxu0 %v695
        %v916 = vpop.f32.mrb[0].mxu0
        %v917 = vadd.f32 %v736, %v916
        %v918 = vpop.f32.mrb[0].mxu0
        %v919 = vpop.f32.mrb[0].mxu0
        %v920 = vadd.f32 %v736, %v919
        %v921 = vpop.f32.mrb[0].mxu0
        %922 = vmatprep.mubr.bf16.mxu0 %v698
        %923 = vmatmul.mubr.bf16.gmra.mrb[0].mxu0 %v697
        %v924 = vpop.f32.mrb[0].mxu0
        %v925 = vadd.f32 %v736, %v924
        %v926 = vpop.f32.mrb[0].mxu0
        %v927 = vpop.f32.mrb[0].mxu0
        %v928 = vadd.f32 %v736, %v927
        %v929 = vpop.f32.mrb[0].mxu0
        %930 = vdwg.mxu0
        %v931 = vmax.f32 %v869, 0.0
        %v932 = vmax.f32 %v872, 0.0
        %v933 = vmax.f32 %v877, 0.0
        %v934 = vmax.f32 %v880, 0.0
        %v935 = vmax.f32 %v885, 0.0
        %v936 = vmax.f32 %v888, 0.0
        %v937 = vmax.f32 %v893, 0.0
        %v938 = vmax.f32 %v896, 0.0
        %v939 = vmax.f32 %v901, 0.0
        %v940 = vmax.f32 %v904, 0.0
        %v941 = vmax.f32 %v909, 0.0
        %v942 = vmax.f32 %v912, 0.0
        %v943 = vmax.f32 %v917, 0.0
        %v944 = vmax.f32 %v920, 0.0
        %v945 = vmax.f32 %v925, 0.0
        %v946 = vmax.f32 %v928, 0.0
        %v947 = vpack.c.bf16 %v932, %v931
        %v948 = vpack.c.bf16 %v934, %v933
        %v949 = vpack.c.bf16 %v936, %v935
        %v950 = vpack.c.bf16 %v938, %v937
        %v951 = vpack.c.bf16 %v940, %v939
        %v952 = vpack.c.bf16 %v942, %v941
        %v953 = vpack.c.bf16 %v944, %v943
        %v954 = vpack.c.bf16 %v946, %v945
        %v955 = vld [vmem:[%s5] sm:$0xf]
        %v956 = vld [vmem:[%s5 + $0x4] sm:$0xf]
        %v957 = vld [vmem:[%s5 + $0x8] sm:$0xf]
        %v958 = vld [vmem:[%s5 + $0xc] sm:$0xf]
        %v959 = vld [vmem:[%s5 + $0x10] sm:$0xf]
        %v960 = vld [vmem:[%s5 + $0x14] sm:$0xf]
        %v961 = vld [vmem:[%s5 + $0x18] sm:$0xf]
        %v962 = vld [vmem:[%s5 + $0x1c] sm:$0xf]
        %v963 = vld [vmem:[%s5 + $0x20] sm:$0xf]
        %v964 = vld [vmem:[%s5 + $0x24] sm:$0xf]
        %v965 = vld [vmem:[%s5 + $0x28] sm:$0xf]
        %v966 = vld [vmem:[%s5 + $0x2c] sm:$0xf]
        %v967 = vld [vmem:[%s5 + $0x30] sm:$0xf]
        %v968 = vld [vmem:[%s5 + $0x34] sm:$0xf]
        %v969 = vld [vmem:[%s5 + $0x38] sm:$0xf]
        %v970 = vld [vmem:[%s5 + $0x3c] sm:$0xf]
        %v971 = vld [vmem:[%s6] sm:$0x1]
        %v973 = vlaneseq
        %v974 = vshrl.u32 %v973, 7
        %v975 = vsub.s32 0, %v974
        %v976 = vrot.slane %v971, %v975
        %v994 = vunpack.c.l.b16 %v955
        %v995 = vunpack.c.l.b16 %v956
        %v996 = vunpack.c.l.b16 %v957
        %v997 = vunpack.c.l.b16 %v958
        %v998 = vunpack.c.l.b16 %v959
        %v999 = vunpack.c.l.b16 %v960
        %v1000 = vunpack.c.l.b16 %v961
        %v1001 = vunpack.c.l.b16 %v962
        %v1002 = vunpack.c.l.b16 %v963
        %v1003 = vunpack.c.l.b16 %v964
        %v1004 = vunpack.c.l.b16 %v965
        %v1005 = vunpack.c.l.b16 %v966
        %v1006 = vunpack.c.l.b16 %v967
        %v1007 = vunpack.c.l.b16 %v968
        %v1008 = vunpack.c.l.b16 %v969
        %v1009 = vunpack.c.l.b16 %v970
        %v1010 = vpack.c.b16 %v995, %v994
        %v1011 = vpack.c.b16 %v997, %v996
        %v1012 = vpack.c.b16 %v999, %v998
        %v1013 = vpack.c.b16 %v1001, %v1000
        %v1014 = vpack.c.b16 %v1003, %v1002
        %v1015 = vpack.c.b16 %v1005, %v1004
        %v1016 = vpack.c.b16 %v1007, %v1006
        %v1017 = vpack.c.b16 %v1009, %v1008
        %1026 = vmatprep.subr.bf16.mxu0 0
        %1027 = vmatpush1.bf16.msra.mxu0 %v1010
        %1028 = vmatprep.subr.bf16.mxu0 0
        %1029 = vmatpush1.bf16.msra.mxu0 %v1011
        %1030 = vmatprep.subr.bf16.mxu0 0
        %1031 = vmatpush1.bf16.msra.mxu0 %v1012
        %1032 = vmatprep.subr.bf16.mxu0 0
        %1033 = vmatpush1.bf16.msra.mxu0 %v1013
        %1034 = vmatprep.subr.bf16.mxu0 0
        %1035 = vmatpush1.bf16.msra.mxu0 %v1014
        %1036 = vmatprep.subr.bf16.mxu0 0
        %1037 = vmatpush1.bf16.msra.mxu0 %v1015
        %1038 = vmatprep.subr.bf16.mxu0 0
        %1039 = vmatpush1.bf16.msra.mxu0 %v1016
        %1040 = vmatprep.subr.bf16.mxu0 0
        %1041 = vmatpush1.bf16.msra.mxu0 %v1017
        %1042 = vmatprep.subr.bf16.mxu0 0
        %1043 = vmatpush1.bf16.msra.mxu0 0
        %1044 = vmatprep.subr.bf16.mxu0 0
        %1045 = vmatpush1.bf16.msra.mxu0 0
        %1046 = vmatprep.subr.bf16.mxu0 0
        %1047 = vmatpush1.bf16.msra.mxu0 0
        %1048 = vmatprep.subr.bf16.mxu0 0
        %1049 = vmatpush1.bf16.msra.mxu0 0
        %1050 = vmatprep.subr.bf16.mxu0 0
        %1051 = vmatpush1.bf16.msra.mxu0 0
        %1052 = vmatprep.subr.bf16.mxu0 0
        %1053 = vmatpush1.bf16.msra.mxu0 0
        %1054 = vmatprep.subr.bf16.mxu0 0
        %1055 = vmatpush1.bf16.msra.mxu0 0
        %1056 = vmatprep.subr.bf16.mxu0 0
        %1057 = vmatpush1.bf16.msra.mxu0 0
        %1058 = vmatprep.mubr.bf16.mxu0 0
        %1059 = vmatmul.mubr.bf16.gmra.mrb[0].mxu0 %v947
        %v1060 = vpop.f32.mrb[0].mxu0
        %v1061 = vadd.f32 %v976, %v1060
        %v1062 = vpop.f32.mrb[0].mxu0
        %v1063 = vpop.f32.mrb[0].mxu0
        %v1064 = vadd.f32 %v976, %v1063
        %v1065 = vpop.f32.mrb[0].mxu0
        %1066 = vmatprep.mubr.bf16.mxu0 0
        %1067 = vmatmul.mubr.bf16.gmra.mrb[0].mxu0 %v948
        %v1068 = vpop.f32.mrb[0].mxu0
        %v1069 = vadd.f32 %v976, %v1068
        %v1070 = vpop.f32.mrb[0].mxu0
        %v1071 = vpop.f32.mrb[0].mxu0
        %v1072 = vadd.f32 %v976, %v1071
        %v1073 = vpop.f32.mrb[0].mxu0
        %1074 = vmatprep.mubr.bf16.mxu0 0
        %1075 = vmatmul.mubr.bf16.gmra.mrb[0].mxu0 %v949
        %v1076 = vpop.f32.mrb[0].mxu0
        %v1077 = vadd.f32 %v976, %v1076
        %v1078 = vpop.f32.mrb[0].mxu0
        %v1079 = vpop.f32.mrb[0].mxu0
        %v1080 = vadd.f32 %v976, %v1079
        %v1081 = vpop.f32.mrb[0].mxu0
        %1082 = vmatprep.mubr.bf16.mxu0 0
        %1083 = vmatmul.mubr.bf16.gmra.mrb[0].mxu0 %v950
        %v1084 = vpop.f32.mrb[0].mxu0
        %v1085 = vadd.f32 %v976, %v1084
        %v1086 = vpop.f32.mrb[0].mxu0
        %v1087 = vpop.f32.mrb[0].mxu0
        %v1088 = vadd.f32 %v976, %v1087
        %v1089 = vpop.f32.mrb[0].mxu0
        %1090 = vmatprep.mubr.bf16.mxu0 0
        %1091 = vmatmul.mubr.bf16.gmra.mrb[0].mxu0 %v951
        %v1092 = vpop.f32.mrb[0].mxu0
        %v1093 = vadd.f32 %v976, %v1092
        %v1094 = vpop.f32.mrb[0].mxu0
        %v1095 = vpop.f32.mrb[0].mxu0
        %v1096 = vadd.f32 %v976, %v1095
        %v1097 = vpop.f32.mrb[0].mxu0
        %1098 = vmatprep.mubr.bf16.mxu0 0
        %1099 = vmatmul.mubr.bf16.gmra.mrb[0].mxu0 %v952
        %v1100 = vpop.f32.mrb[0].mxu0
        %v1101 = vadd.f32 %v976, %v1100
        %v1102 = vpop.f32.mrb[0].mxu0
        %v1103 = vpop.f32.mrb[0].mxu0
        %v1104 = vadd.f32 %v976, %v1103
        %v1105 = vpop.f32.mrb[0].mxu0
        %1106 = vmatprep.mubr.bf16.mxu0 0
        %1107 = vmatmul.mubr.bf16.gmra.mrb[0].mxu0 %v953
        %v1108 = vpop.f32.mrb[0].mxu0
        %v1109 = vadd.f32 %v976, %v1108
        %v1110 = vpop.f32.mrb[0].mxu0
        %v1111 = vpop.f32.mrb[0].mxu0
        %v1112 = vadd.f32 %v976, %v1111
        %v1113 = vpop.f32.mrb[0].mxu0
        %1114 = vmatprep.mubr.bf16.mxu0 0
        %1115 = vmatmul.mubr.bf16.gmra.mrb[0].mxu0 %v954
        %v1116 = vpop.f32.mrb[0].mxu0
        %v1117 = vadd.f32 %v976, %v1116
        %v1118 = vpop.f32.mrb[0].mxu0
        %v1119 = vpop.f32.mrb[0].mxu0
        %v1120 = vadd.f32 %v976, %v1119
        %v1121 = vpop.f32.mrb[0].mxu0
        %1122 = vdwg.mxu0
        %v1123 = vmax.f32 %v1061, 0.0
        %v1124 = vmax.f32 %v1064, 0.0
        %v1125 = vmax.f32 %v1069, 0.0
        %v1126 = vmax.f32 %v1072, 0.0
        %v1127 = vmax.f32 %v1077, 0.0
        %v1128 = vmax.f32 %v1080, 0.0
        %v1129 = vmax.f32 %v1085, 0.0
        %v1130 = vmax.f32 %v1088, 0.0
        %v1131 = vmax.f32 %v1093, 0.0
        %v1132 = vmax.f32 %v1096, 0.0
        %v1133 = vmax.f32 %v1101, 0.0
        %v1134 = vmax.f32 %v1104, 0.0
        %v1135 = vmax.f32 %v1109, 0.0
        %v1136 = vmax.f32 %v1112, 0.0
        %v1137 = vmax.f32 %v1117, 0.0
        %v1138 = vmax.f32 %v1120, 0.0
        %v1139 = vpack.c.bf16 %v1124, %v1123
        %v1140 = vpack.c.bf16 %v1126, %v1125
        %v1141 = vpack.c.bf16 %v1128, %v1127
        %v1142 = vpack.c.bf16 %v1130, %v1129
        %v1143 = vpack.c.bf16 %v1132, %v1131
        %v1144 = vpack.c.bf16 %v1134, %v1133
        %v1145 = vpack.c.bf16 %v1136, %v1135
        %v1146 = vpack.c.bf16 %v1138, %v1137
        %v1147 = vld [vmem:[%s7] sm:$0xf]
        %v1148 = vld [vmem:[%s7 + $0x4] sm:$0xf]
        %v1149 = vld [vmem:[%s7 + $0x8] sm:$0xf]
        %v1150 = vld [vmem:[%s7 + $0xc] sm:$0xf]
        %v1151 = vld [vmem:[%s7 + $0x10] sm:$0xf]
        %v1152 = vld [vmem:[%s7 + $0x14] sm:$0xf]
        %v1153 = vld [vmem:[%s7 + $0x18] sm:$0xf]
        %v1154 = vld [vmem:[%s7 + $0x1c] sm:$0xf]
        %v1155 = vld [vmem:[%s7 + $0x20] sm:$0xf]
        %v1156 = vld [vmem:[%s7 + $0x24] sm:$0xf]
        %v1157 = vld [vmem:[%s7 + $0x28] sm:$0xf]
        %v1158 = vld [vmem:[%s7 + $0x2c] sm:$0xf]
        %v1159 = vld [vmem:[%s7 + $0x30] sm:$0xf]
        %v1160 = vld [vmem:[%s7 + $0x34] sm:$0xf]
        %v1161 = vld [vmem:[%s7 + $0x38] sm:$0xf]
        %v1162 = vld [vmem:[%s7 + $0x3c] sm:$0xf]
        %v1163 = vld [vmem:[%s8] sm:$0x1]
        %v1165 = vlaneseq
        %v1166 = vshrl.u32 %v1165, 7
        %v1167 = vsub.s32 0, %v1166
        %v1168 = vrot.slane %v1163, %v1167
        %v1186 = vunpack.c.l.b16 %v1147
        %v1187 = vunpack.c.l.b16 %v1148
        %v1188 = vunpack.c.l.b16 %v1149
        %v1189 = vunpack.c.l.b16 %v1150
        %v1190 = vunpack.c.l.b16 %v1151
        %v1191 = vunpack.c.l.b16 %v1152
        %v1192 = vunpack.c.l.b16 %v1153
        %v1193 = vunpack.c.l.b16 %v1154
        %v1194 = vunpack.c.l.b16 %v1155
        %v1195 = vunpack.c.l.b16 %v1156
        %v1196 = vunpack.c.l.b16 %v1157
        %v1197 = vunpack.c.l.b16 %v1158
        %v1198 = vunpack.c.l.b16 %v1159
        %v1199 = vunpack.c.l.b16 %v1160
        %v1200 = vunpack.c.l.b16 %v1161
        %v1201 = vunpack.c.l.b16 %v1162
        %v1202 = vpack.c.b16 %v1187, %v1186
        %v1203 = vpack.c.b16 %v1189, %v1188
        %v1204 = vpack.c.b16 %v1191, %v1190
        %v1205 = vpack.c.b16 %v1193, %v1192
        %v1206 = vpack.c.b16 %v1195, %v1194
        %v1207 = vpack.c.b16 %v1197, %v1196
        %v1208 = vpack.c.b16 %v1199, %v1198
        %v1209 = vpack.c.b16 %v1201, %v1200
        %1218 = vmatprep.subr.bf16.mxu0 0
        %1219 = vmatpush1.bf16.msra.mxu0 %v1202
        %1220 = vmatprep.subr.bf16.mxu0 0
        %1221 = vmatpush1.bf16.msra.mxu0 %v1203
        %1222 = vmatprep.subr.bf16.mxu0 0
        %1223 = vmatpush1.bf16.msra.mxu0 %v1204
        %1224 = vmatprep.subr.bf16.mxu0 0
        %1225 = vmatpush1.bf16.msra.mxu0 %v1205
        %1226 = vmatprep.subr.bf16.mxu0 0
        %1227 = vmatpush1.bf16.msra.mxu0 %v1206
        %1228 = vmatprep.subr.bf16.mxu0 0
        %1229 = vmatpush1.bf16.msra.mxu0 %v1207
        %1230 = vmatprep.subr.bf16.mxu0 0
        %1231 = vmatpush1.bf16.msra.mxu0 %v1208
        %1232 = vmatprep.subr.bf16.mxu0 0
        %1233 = vmatpush1.bf16.msra.mxu0 %v1209
        %1234 = vmatprep.subr.bf16.mxu0 0
        %1235 = vmatpush1.bf16.msra.mxu0 0
        %1236 = vmatprep.subr.bf16.mxu0 0
        %1237 = vmatpush1.bf16.msra.mxu0 0
        %1238 = vmatprep.subr.bf16.mxu0 0
        %1239 = vmatpush1.bf16.msra.mxu0 0
        %1240 = vmatprep.subr.bf16.mxu0 0
        %1241 = vmatpush1.bf16.msra.mxu0 0
        %1242 = vmatprep.subr.bf16.mxu0 0
        %1243 = vmatpush1.bf16.msra.mxu0 0
        %1244 = vmatprep.subr.bf16.mxu0 0
        %1245 = vmatpush1.bf16.msra.mxu0 0
        %1246 = vmatprep.subr.bf16.mxu0 0
        %1247 = vmatpush1.bf16.msra.mxu0 0
        %1248 = vmatprep.subr.bf16.mxu0 0
        %1249 = vmatpush1.bf16.msra.mxu0 0
        %1250 = vmatprep.mubr.bf16.mxu0 0
        %1251 = vmatmul.mubr.bf16.gmra.mrb[0].mxu0 %v1139
        %v1252 = vpop.f32.mrb[0].mxu0
        %v1253 = vadd.f32 %v1168, %v1252
        %v1254 = vpop.f32.mrb[0].mxu0
        %v1255 = vpop.f32.mrb[0].mxu0
        %v1256 = vadd.f32 %v1168, %v1255
        %v1257 = vpop.f32.mrb[0].mxu0
        %1258 = vmatprep.mubr.bf16.mxu0 0
        %1259 = vmatmul.mubr.bf16.gmra.mrb[0].mxu0 %v1140
        %v1260 = vpop.f32.mrb[0].mxu0
        %v1261 = vadd.f32 %v1168, %v1260
        %v1262 = vpop.f32.mrb[0].mxu0
        %v1263 = vpop.f32.mrb[0].mxu0
        %v1264 = vadd.f32 %v1168, %v1263
        %v1265 = vpop.f32.mrb[0].mxu0
        %1266 = vmatprep.mubr.bf16.mxu0 0
        %1267 = vmatmul.mubr.bf16.gmra.mrb[0].mxu0 %v1141
        %v1268 = vpop.f32.mrb[0].mxu0
        %v1269 = vadd.f32 %v1168, %v1268
        %v1270 = vpop.f32.mrb[0].mxu0
        %v1271 = vpop.f32.mrb[0].mxu0
        %v1272 = vadd.f32 %v1168, %v1271
        %v1273 = vpop.f32.mrb[0].mxu0
        %1274 = vmatprep.mubr.bf16.mxu0 0
        %1275 = vmatmul.mubr.bf16.gmra.mrb[0].mxu0 %v1142
        %v1276 = vpop.f32.mrb[0].mxu0
        %v1277 = vadd.f32 %v1168, %v1276
        %v1278 = vpop.f32.mrb[0].mxu0
        %v1279 = vpop.f32.mrb[0].mxu0
        %v1280 = vadd.f32 %v1168, %v1279
        %v1281 = vpop.f32.mrb[0].mxu0
        %1282 = vmatprep.mubr.bf16.mxu0 0
        %1283 = vmatmul.mubr.bf16.gmra.mrb[0].mxu0 %v1143
        %v1284 = vpop.f32.mrb[0].mxu0
        %v1285 = vadd.f32 %v1168, %v1284
        %v1286 = vpop.f32.mrb[0].mxu0
        %v1287 = vpop.f32.mrb[0].mxu0
        %v1288 = vadd.f32 %v1168, %v1287
        %v1289 = vpop.f32.mrb[0].mxu0
        %1290 = vmatprep.mubr.bf16.mxu0 0
        %1291 = vmatmul.mubr.bf16.gmra.mrb[0].mxu0 %v1144
        %v1292 = vpop.f32.mrb[0].mxu0
        %v1293 = vadd.f32 %v1168, %v1292
        %v1294 = vpop.f32.mrb[0].mxu0
        %v1295 = vpop.f32.mrb[0].mxu0
        %v1296 = vadd.f32 %v1168, %v1295
        %v1297 = vpop.f32.mrb[0].mxu0
        %1298 = vmatprep.mubr.bf16.mxu0 0
        %1299 = vmatmul.mubr.bf16.gmra.mrb[0].mxu0 %v1145
        %v1300 = vpop.f32.mrb[0].mxu0
        %v1301 = vadd.f32 %v1168, %v1300
        %v1302 = vpop.f32.mrb[0].mxu0
        %v1303 = vpop.f32.mrb[0].mxu0
        %v1304 = vadd.f32 %v1168, %v1303
        %v1305 = vpop.f32.mrb[0].mxu0
        %1306 = vmatprep.mubr.bf16.mxu0 0
        %1307 = vmatmul.mubr.bf16.gmra.mrb[0].mxu0 %v1146
        %v1308 = vpop.f32.mrb[0].mxu0
        %v1309 = vadd.f32 %v1168, %v1308
        %v1310 = vpop.f32.mrb[0].mxu0
        %v1311 = vpop.f32.mrb[0].mxu0
        %v1312 = vadd.f32 %v1168, %v1311
        %v1313 = vpop.f32.mrb[0].mxu0
        %1314 = vdwg.mxu0
        %v1315 = vmax.f32 %v1253, 0.0
        %v1316 = vmax.f32 %v1256, 0.0
        %v1317 = vmax.f32 %v1261, 0.0
        %v1318 = vmax.f32 %v1264, 0.0
        %v1319 = vmax.f32 %v1269, 0.0
        %v1320 = vmax.f32 %v1272, 0.0
        %v1321 = vmax.f32 %v1277, 0.0
        %v1322 = vmax.f32 %v1280, 0.0
        %v1323 = vmax.f32 %v1285, 0.0
        %v1324 = vmax.f32 %v1288, 0.0
        %v1325 = vmax.f32 %v1293, 0.0
        %v1326 = vmax.f32 %v1296, 0.0
        %v1327 = vmax.f32 %v1301, 0.0
        %v1328 = vmax.f32 %v1304, 0.0
        %v1329 = vmax.f32 %v1309, 0.0
        %v1330 = vmax.f32 %v1312, 0.0
        %v1331 = vpack.c.bf16 %v1316, %v1315
        %v1332 = vpack.c.bf16 %v1318, %v1317
        %v1333 = vpack.c.bf16 %v1320, %v1319
        %v1334 = vpack.c.bf16 %v1322, %v1321
        %v1335 = vpack.c.bf16 %v1324, %v1323
        %v1336 = vpack.c.bf16 %v1326, %v1325
        %v1337 = vpack.c.bf16 %v1328, %v1327
        %v1338 = vpack.c.bf16 %v1330, %v1329
        %v1339 = vld [vmem:[#allocation4] sm:$0xf]
        %v1340 = vld [vmem:[#allocation4 + $0x4] sm:$0xf]
        %v1341 = vld [vmem:[#allocation4 + $0x8] sm:$0xf]
        %v1342 = vld [vmem:[#allocation4 + $0xc] sm:$0xf]
        %v1343 = vld [vmem:[#allocation4 + $0x10] sm:$0xf]
        %v1344 = vld [vmem:[#allocation4 + $0x14] sm:$0xf]
        %v1345 = vld [vmem:[#allocation4 + $0x18] sm:$0xf]
        %v1346 = vld [vmem:[#allocation4 + $0x1c] sm:$0xf]
        %v1347 = vld [vmem:[#allocation4 + $0x20] sm:$0xf]
        %v1348 = vld [vmem:[#allocation4 + $0x24] sm:$0xf]
        %v1349 = vld [vmem:[#allocation4 + $0x28] sm:$0xf]
        %v1350 = vld [vmem:[#allocation4 + $0x2c] sm:$0xf]
        %v1351 = vld [vmem:[#allocation4 + $0x30] sm:$0xf]
        %v1352 = vld [vmem:[#allocation4 + $0x34] sm:$0xf]
        %v1353 = vld [vmem:[#allocation4 + $0x38] sm:$0xf]
        %v1354 = vld [vmem:[#allocation4 + $0x3c] sm:$0xf]
        %v1355 = vld [vmem:[%s10] sm:$0x1]
        %v1357 = vlaneseq
        %v1358 = vshrl.u32 %v1357, 7
        %v1359 = vsub.s32 0, %v1358
        %v1360 = vrot.slane %v1355, %v1359
        %v1378 = vunpack.c.l.b16 %v1339
        %v1379 = vunpack.c.l.b16 %v1340
        %v1380 = vunpack.c.l.b16 %v1341
        %v1381 = vunpack.c.l.b16 %v1342
        %v1382 = vunpack.c.l.b16 %v1343
        %v1383 = vunpack.c.l.b16 %v1344
        %v1384 = vunpack.c.l.b16 %v1345
        %v1385 = vunpack.c.l.b16 %v1346
        %v1386 = vunpack.c.l.b16 %v1347
        %v1387 = vunpack.c.l.b16 %v1348
        %v1388 = vunpack.c.l.b16 %v1349
        %v1389 = vunpack.c.l.b16 %v1350
        %v1390 = vunpack.c.l.b16 %v1351
        %v1391 = vunpack.c.l.b16 %v1352
        %v1392 = vunpack.c.l.b16 %v1353
        %v1393 = vunpack.c.l.b16 %v1354
        %v1394 = vpack.c.b16 %v1379, %v1378
        %v1395 = vpack.c.b16 %v1381, %v1380
        %v1396 = vpack.c.b16 %v1383, %v1382
        %v1397 = vpack.c.b16 %v1385, %v1384
        %v1398 = vpack.c.b16 %v1387, %v1386
        %v1399 = vpack.c.b16 %v1389, %v1388
        %v1400 = vpack.c.b16 %v1391, %v1390
        %v1401 = vpack.c.b16 %v1393, %v1392
        %1410 = vmatprep.subr.bf16.mxu0 0
        %1411 = vmatpush1.bf16.msra.mxu0 %v1394
        %1412 = vmatprep.subr.bf16.mxu0 0
        %1413 = vmatpush1.bf16.msra.mxu0 %v1395
        %1414 = vmatprep.subr.bf16.mxu0 0
        %1415 = vmatpush1.bf16.msra.mxu0 %v1396
        %1416 = vmatprep.subr.bf16.mxu0 0
        %1417 = vmatpush1.bf16.msra.mxu0 %v1397
        %1418 = vmatprep.subr.bf16.mxu0 0
        %1419 = vmatpush1.bf16.msra.mxu0 %v1398
        %1420 = vmatprep.subr.bf16.mxu0 0
        %1421 = vmatpush1.bf16.msra.mxu0 %v1399
        %1422 = vmatprep.subr.bf16.mxu0 0
        %1423 = vmatpush1.bf16.msra.mxu0 %v1400
        %1424 = vmatprep.subr.bf16.mxu0 0
        %1425 = vmatpush1.bf16.msra.mxu0 %v1401
        %1426 = vmatprep.subr.bf16.mxu0 0
        %1427 = vmatpush1.bf16.msra.mxu0 0
        %1428 = vmatprep.subr.bf16.mxu0 0
        %1429 = vmatpush1.bf16.msra.mxu0 0
        %1430 = vmatprep.subr.bf16.mxu0 0
        %1431 = vmatpush1.bf16.msra.mxu0 0
        %1432 = vmatprep.subr.bf16.mxu0 0
        %1433 = vmatpush1.bf16.msra.mxu0 0
        %1434 = vmatprep.subr.bf16.mxu0 0
        %1435 = vmatpush1.bf16.msra.mxu0 0
        %1436 = vmatprep.subr.bf16.mxu0 0
        %1437 = vmatpush1.bf16.msra.mxu0 0
        %1438 = vmatprep.subr.bf16.mxu0 0
        %1439 = vmatpush1.bf16.msra.mxu0 0
        %1440 = vmatprep.subr.bf16.mxu0 0
        %1441 = vmatpush1.bf16.msra.mxu0 0
        %1442 = vmatprep.mubr.bf16.mxu0 0
        %1443 = vmatmul.mubr.bf16.gmra.mrb[0].mxu0 %v1331
        %v1444 = vpop.f32.mrb[0].mxu0
        %v1445 = vadd.f32 %v1360, %v1444
        %v1446 = vpop.f32.mrb[0].mxu0
        %v1447 = vpop.f32.mrb[0].mxu0
        %v1448 = vadd.f32 %v1360, %v1447
        %v1449 = vpop.f32.mrb[0].mxu0
        %1450 = vmatprep.mubr.bf16.mxu0 0
        %1451 = vmatmul.mubr.bf16.gmra.mrb[0].mxu0 %v1332
        %v1452 = vpop.f32.mrb[0].mxu0
        %v1453 = vadd.f32 %v1360, %v1452
        %v1454 = vpop.f32.mrb[0].mxu0
        %v1455 = vpop.f32.mrb[0].mxu0
        %v1456 = vadd.f32 %v1360, %v1455
        %v1457 = vpop.f32.mrb[0].mxu0
        %1458 = vmatprep.mubr.bf16.mxu0 0
        %1459 = vmatmul.mubr.bf16.gmra.mrb[0].mxu0 %v1333
        %v1460 = vpop.f32.mrb[0].mxu0
        %v1461 = vadd.f32 %v1360, %v1460
        %v1462 = vpop.f32.mrb[0].mxu0
        %v1463 = vpop.f32.mrb[0].mxu0
        %v1464 = vadd.f32 %v1360, %v1463
        %v1465 = vpop.f32.mrb[0].mxu0
        %1466 = vmatprep.mubr.bf16.mxu0 0
        %1467 = vmatmul.mubr.bf16.gmra.mrb[0].mxu0 %v1334
        %v1468 = vpop.f32.mrb[0].mxu0
        %v1469 = vadd.f32 %v1360, %v1468
        %v1470 = vpop.f32.mrb[0].mxu0
        %v1471 = vpop.f32.mrb[0].mxu0
        %v1472 = vadd.f32 %v1360, %v1471
        %v1473 = vpop.f32.mrb[0].mxu0
        %1474 = vmatprep.mubr.bf16.mxu0 0
        %1475 = vmatmul.mubr.bf16.gmra.mrb[0].mxu0 %v1335
        %v1476 = vpop.f32.mrb[0].mxu0
        %v1477 = vadd.f32 %v1360, %v1476
        %v1478 = vpop.f32.mrb[0].mxu0
        %v1479 = vpop.f32.mrb[0].mxu0
        %v1480 = vadd.f32 %v1360, %v1479
        %v1481 = vpop.f32.mrb[0].mxu0
        %1482 = vmatprep.mubr.bf16.mxu0 0
        %1483 = vmatmul.mubr.bf16.gmra.mrb[0].mxu0 %v1336
        %v1484 = vpop.f32.mrb[0].mxu0
        %v1485 = vadd.f32 %v1360, %v1484
        %v1486 = vpop.f32.mrb[0].mxu0
        %v1487 = vpop.f32.mrb[0].mxu0
        %v1488 = vadd.f32 %v1360, %v1487
        %v1489 = vpop.f32.mrb[0].mxu0
        %1490 = vmatprep.mubr.bf16.mxu0 0
        %1491 = vmatmul.mubr.bf16.gmra.mrb[0].mxu0 %v1337
        %v1492 = vpop.f32.mrb[0].mxu0
        %v1493 = vadd.f32 %v1360, %v1492
        %v1494 = vpop.f32.mrb[0].mxu0
        %v1495 = vpop.f32.mrb[0].mxu0
        %v1496 = vadd.f32 %v1360, %v1495
        %v1497 = vpop.f32.mrb[0].mxu0
        %1498 = vmatprep.mubr.bf16.mxu0 0
        %1499 = vmatmul.mubr.bf16.gmra.mrb[0].mxu0 %v1338
        %v1500 = vpop.f32.mrb[0].mxu0
        %v1501 = vadd.f32 %v1360, %v1500
        %v1502 = vpop.f32.mrb[0].mxu0
        %v1503 = vpop.f32.mrb[0].mxu0
        %v1504 = vadd.f32 %v1360, %v1503
        %v1505 = vpop.f32.mrb[0].mxu0
        %1506 = vdwg.mxu0
        %1507 = vst [vmem:[%s418] sm:$0xff] %v1445
        %1508 = vst [vmem:[%s418 + $0x8] sm:$0xff] %v1448
        %1509 = vst [vmem:[%s418 + $0x10] sm:$0xff] %v1453
        %1510 = vst [vmem:[%s418 + $0x18] sm:$0xff] %v1456
        %1511 = vst [vmem:[%s418 + $0x20] sm:$0xff] %v1461
        %1512 = vst [vmem:[%s418 + $0x28] sm:$0xff] %v1464
        %1513 = vst [vmem:[%s418 + $0x30] sm:$0xff] %v1469
        %1514 = vst [vmem:[%s418 + $0x38] sm:$0xff] %v1472
        %1515 = vst [vmem:[%s418 + $0x40] sm:$0xff] %v1477
        %1516 = vst [vmem:[%s418 + $0x48] sm:$0xff] %v1480
        %1517 = vst [vmem:[%s418 + $0x50] sm:$0xff] %v1485
        %1518 = vst [vmem:[%s418 + $0x58] sm:$0xff] %v1488
        %1519 = vst [vmem:[%s418 + $0x60] sm:$0xff] %v1493
        %1520 = vst [vmem:[%s418 + $0x68] sm:$0xff] %v1496
        %1521 = vst [vmem:[%s418 + $0x70] sm:$0xff] %v1501
        %1522 = vst [vmem:[%s418 + $0x78] sm:$0xff] %v1504
        %s1523 = smul.u32 16, %s24
        %p1524 = scmp.lt.s32.totalorder %s1523, 31
        %s1525 = scalar_select %p1524, %s1523, 31
        %s1526 = smul.addr %s1525, 8
        %s1527 = scalar_lea.vmem %s11, %s1526
        // Predicated region
        $region73: #{_forward_impl.1} parent=63 // pred_check
          %p1528 = pneg %p278
        $region74: #{_forward_impl.1} parent=63 // pred_check_branch
          %1530 = sbr.rel (%p1528) target = $region76
        $region75: #{_forward_impl.1} parent=63 // pred_region
          %s1531 = smul.u32 16, %s24
        $region76: #{_forward_impl.1} parent=63 // pred_fallthru
          _
      $region64: #{_forward_impl.1} parent=5 // pred_fallthru
        _
      %p1532 = scmp.le.s32.totalorder 2, %s19
      // Predicated region
      $region77: #{_forward_impl.1} parent=5 // pred_check
        %p1533 = pneg %p1532
      $region78: #{_forward_impl.1} parent=5 // pred_check_branch
        %1535 = sbr.rel (%p1533) target = $region80
      $region79: #{_forward_impl.1} parent=5 // pred_region
        %s1536 = ssub.s32 %s19, 2
        // Predicated region
        $region81: #{_forward_impl.1} parent=79 // pred_check
          %p1537 = pneg %p284
        $region82: #{_forward_impl.1} parent=79 // pred_check_branch
          %1539 = sbr.rel (%p1537) target = $region84
        $region83: #{_forward_impl.1} parent=79 // pred_region
          %s1540 = smul.u32 16, %s25
          %p1541 = scmp.lt.s32.totalorder %s1540, 31
          %s1542 = scalar_select %p1541, %s1540, 31
          %s1543 = smul.addr %s1542, 8
          %s1544 = scalar_lea.vmem %s11, %s1543
        $region84: #{_forward_impl.1} parent=79 // pred_fallthru
          _
      $region80: #{_forward_impl.1} parent=5 // pred_fallthru
        _
    $region6: #{_forward_impl.1} parent=1 // loop_footer
      %s23 = sadd.s32 1, %s19
    $region7: #{_forward_impl.1} parent=1 // loop_footer_branch
      %18 = sbr.rel target = $region3
    $region8: #{_forward_impl.1} parent=1 // loop_exit
      _
    %1545 = vsyncpa [#allocation3], 1
    %s1546 = scalar_lea.sflag [#allocation3], 1
    %1547 = vsyncpa %s1546, 1
    %1548 = vsyncpa [#allocation5], 1

</llo_original>
